<compile_context>
chip_gen: v5e
topology: v5e:2x2
jax: 0.10.0
libtpu: 0.0.40
codegen_flags: <defaults>
</compile_context>

<pallas_src>
import functools

import jax
import jax.numpy as jnp
from jax.experimental import pallas as pl
from jax.experimental.pallas import tpu as pltpu


def _lstm_kernel(x_ref, len_ref, wih_ref, whh_ref, b_ref, wfc_ref, bfc_ref,
                 out_ref, *, seq_len, batch_pad, hidden_pad):
    T, BP, HP = seq_len, batch_pad, hidden_pad

    # --- input projection for ALL timesteps in one MXU pass: (T*BP, I) @ (I, 4*HP) ---
    xg = (jnp.dot(x_ref[...], wih_ref[...], preferred_element_type=jnp.float32)
          + b_ref[...])                       # (T*BP, 4*HP), bias folded in

    whh = whh_ref[...]                        # (HP, 4*HP), resident for the whole loop
    lens = len_ref[...]                       # (BP, 1) int32

    h = jnp.zeros((BP, HP), jnp.float32)
    c = jnp.zeros((BP, HP), jnp.float32)

    # Fully unrolled recurrence; every slice below is static and (8,128)-aligned.
    for t in range(T):
        gates = (xg[t * BP:(t + 1) * BP, :]
                 + jnp.dot(h, whh, preferred_element_type=jnp.float32))  # (BP, 4*HP)

        # PyTorch gate order [i, f, g, o]; each slice is exactly HP=128 lanes wide.
        i_g = jax.nn.sigmoid(gates[:, 0 * HP:1 * HP])
        f_g = jax.nn.sigmoid(gates[:, 1 * HP:2 * HP])
        g_g = jnp.tanh(gates[:, 2 * HP:3 * HP])
        o_g = jax.nn.sigmoid(gates[:, 3 * HP:4 * HP])

        c_new = f_g * c + i_g * g_g
        h_new = o_g * jnp.tanh(c_new)

        # pack_padded_sequence semantics: state freezes once t >= length,
        # so the final h is the hidden state at each sequence's last valid step.
        upd = lens > t                        # (BP, 1) bool, broadcasts over HP lanes
        h = jnp.where(upd, h_new, h)
        c = jnp.where(upd, c_new, c)

    # Final FC (H -> 1) as a lane reduction (no N=1 MXU matmul), then sigmoid.
    logit = jnp.sum(h * wfc_ref[...], axis=-1, keepdims=True) + bfc_ref[...]
    out_ref[...] = jax.nn.sigmoid(logit)


def packed_lstm_classifier(x, lengths, params):
    """x: (B, T, I) float32, lengths: (B,) int. Returns (B,) float32 probabilities."""
    B, T, I = x.shape
    H = params["w_hh_t"].shape[0]
    HP = ((H + 127) // 128) * 128             # lane-align the hidden size
    BP = ((B + 7) // 8) * 8                   # sublane-align the batch

    def pad_gate_cols(w):                     # (..., 4H) -> (..., 4*HP), per-gate zero pad
        lead = w.shape[:-1]
        w4 = w.reshape(lead + (4, H))
        w4 = jnp.pad(w4, [(0, 0)] * len(lead) + [(0, 0), (0, HP - H)])
        return w4.reshape(lead + (4 * HP,))

    wih_p = pad_gate_cols(params["w_ih_t"])                               # (I, 4*HP)
    whh_p = jnp.pad(pad_gate_cols(params["w_hh_t"]), ((0, HP - H), (0, 0)))  # (HP, 4*HP)
    bias_p = pad_gate_cols((params["b_ih"] + params["b_hh"]).reshape(1, 4 * H))  # (1, 4*HP)
    wfc_row = jnp.pad(params["w_fc_t"][:, 0], (0, HP - H)).reshape(1, HP)  # (1, HP)
    bfc = params["b_fc"].reshape(1, 1).astype(jnp.float32)                 # (1, 1)

    # Time-major, batch-padded, flattened to 2D so the in-kernel projection is one matmul.
    x_tm = jnp.transpose(x, (1, 0, 2))                          # (T, B, I)
    x_tm = jnp.pad(x_tm, ((0, 0), (0, BP - B), (0, 0)))         # (T, BP, I)
    x2d = x_tm.reshape(T * BP, I).astype(jnp.float32)           # (T*BP, I)

    len_p = jnp.pad(lengths.astype(jnp.int32), (0, BP - B)).reshape(BP, 1)

    kernel = functools.partial(_lstm_kernel, seq_len=T, batch_pad=BP, hidden_pad=HP)

    out = pl.pallas_call(
        kernel,
        out_shape=jax.ShapeDtypeStruct((BP, 1), jnp.float32),
        grid_spec=pltpu.PrefetchScalarGridSpec(
            num_scalar_prefetch=0,
            grid=(1,),                                   # single invocation; loop lives in-kernel
            in_specs=[
                pl.BlockSpec((T * BP, I), lambda i: (0, 0)),     # x, time-major flattened
                pl.BlockSpec((BP, 1), lambda i: (0, 0)),         # lengths
                pl.BlockSpec((I, 4 * HP), lambda i: (0, 0)),     # W_ih^T (gate-padded)
                pl.BlockSpec((HP, 4 * HP), lambda i: (0, 0)),    # W_hh^T (padded)
                pl.BlockSpec((1, 4 * HP), lambda i: (0, 0)),     # b_ih + b_hh (padded)
                pl.BlockSpec((1, HP), lambda i: (0, 0)),         # fc weight row (padded)
                pl.BlockSpec((1, 1), lambda i: (0, 0)),          # fc bias
            ],
            out_specs=pl.BlockSpec((BP, 1), lambda i: (0, 0)),
        ),
        compiler_params=pltpu.CompilerParams(
            dimension_semantics=("arbitrary",)),
    )(x2d, len_p, wih_p, whh_p, bias_p, wfc_row, bfc)

    return out[:B, 0]   # .squeeze() -> (B,)


def init_params(key, input_size, hidden_size):
    """Deterministic init matching PyTorch default U(-1/sqrt(H), 1/sqrt(H)) shapes."""
    ks = jax.random.split(key, 6)
    bound = 1.0 / jnp.sqrt(hidden_size)
    u = lambda k, shape: jax.random.uniform(
        k, shape, jnp.float32, minval=-bound, maxval=bound)
    return {
        "w_ih_t": u(ks[0], (input_size, 4 * hidden_size)),   # W_ih (4H,I) transposed
        "w_hh_t": u(ks[1], (hidden_size, 4 * hidden_size)),  # W_hh (4H,H) transposed
        "b_ih": u(ks[2], (4 * hidden_size,)),
        "b_hh": u(ks[3], (4 * hidden_size,)),
        "w_fc_t": u(ks[4], (hidden_size, 1)),                # fc weight (1,H) transposed
        "b_fc": u(ks[5], (1,)),
    }


def _reference(x, lengths, params):
    """Pure-JAX reference of the same forward (masked LSTM scan), unpadded."""
    B, T, I = x.shape
    H = params["w_hh_t"].shape[0]
    bias = params["b_ih"] + params["b_hh"]

    def step(carry, inp):
        h, c = carry
        x_t, t = inp
        gates = x_t @ params["w_ih_t"] + h @ params["w_hh_t"] + bias
        i_g = jax.nn.sigmoid(gates[:, 0 * H:1 * H])
        f_g = jax.nn.sigmoid(gates[:, 1 * H:2 * H])
        g_g = jnp.tanh(gates[:, 2 * H:3 * H])
        o_g = jax.nn.sigmoid(gates[:, 3 * H:4 * H])
        c_new = f_g * c + i_g * g_g
        h_new = o_g * jnp.tanh(c_new)
        mask = (lengths > t)[:, None]
        return (jnp.where(mask, h_new, h), jnp.where(mask, c_new, c)), None

    init = (jnp.zeros((B, H), jnp.float32), jnp.zeros((B, H), jnp.float32))
    (h, _), _ = jax.lax.scan(step, init,
                             (jnp.transpose(x, (1, 0, 2)), jnp.arange(T)))
    logit = h @ params["w_fc_t"] + params["b_fc"][None, :]
    return jax.nn.sigmoid(logit)[:, 0]


if __name__ == "__main__":
    B, T, I, H = 4, 8, 34, 64   # input_size=34, hidden_size=64 per the module
    key = jax.random.PRNGKey(0)
    k_x, k_p = jax.random.split(key)

    x = jax.random.normal(k_x, (B, T, I), jnp.float32)
    lengths = jnp.array([8, 5, 3, 6], jnp.int32)
    params = init_params(k_p, I, H)

    out = jax.block_until_ready(packed_lstm_classifier(x, lengths, params))
    ref = _reference(x, lengths, params)
    assert out.shape == (B,)
    assert jnp.allclose(out, ref, rtol=1e-4, atol=1e-5), (out, ref)
    print("KERNEL_OK")
</pallas_src>

<mosaic_0001>
module attributes {stable_mosaic.version = 11 : i64} {
  func.func @_lstm_kernel(%arg0: i32, %arg1: memref<64x34xf32, #tpu.memory_space<vmem>>, %arg2: memref<8x1xi32, #tpu.memory_space<vmem>>, %arg3: memref<34x512xf32, #tpu.memory_space<vmem>>, %arg4: memref<128x512xf32, #tpu.memory_space<vmem>>, %arg5: memref<1x512xf32, #tpu.memory_space<vmem>>, %arg6: memref<1x128xf32, #tpu.memory_space<vmem>>, %arg7: memref<1x1xf32, #tpu.memory_space<vmem>>, %arg8: memref<8x1xf32, #tpu.memory_space<vmem>>) attributes {dimension_semantics = [#tpu.dimension_semantics<arbitrary>], iteration_bounds = array<i64: 1>, scalar_prefetch = 0 : i64, scratch_operands = 0 : i64, tpu.core_type = #tpu.core_type<tc>, window_params = [{pipeline_mode = #tpu.pipeline_mode<synchronous>, transform_indices = @transform_0, window_bounds = array<i64: 64, 34>}, {pipeline_mode = #tpu.pipeline_mode<synchronous>, transform_indices = @transform_1, window_bounds = array<i64: 8, 1>}, {pipeline_mode = #tpu.pipeline_mode<synchronous>, transform_indices = @transform_2, window_bounds = array<i64: 34, 512>}, {pipeline_mode = #tpu.pipeline_mode<synchronous>, transform_indices = @transform_3, window_bounds = array<i64: 128, 512>}, {pipeline_mode = #tpu.pipeline_mode<synchronous>, transform_indices = @transform_4, window_bounds = array<i64: 1, 512>}, {pipeline_mode = #tpu.pipeline_mode<synchronous>, transform_indices = @transform_5, window_bounds = array<i64: 1, 128>}, {pipeline_mode = #tpu.pipeline_mode<synchronous>, transform_indices = @transform_6, window_bounds = array<i64: 1, 1>}, {pipeline_mode = #tpu.pipeline_mode<synchronous>, transform_indices = @transform_7, window_bounds = array<i64: 8, 1>}]} {
    %c0 = arith.constant 0 : index
    %c0_0 = arith.constant 0 : index
    %0 = vector.load %arg1[%c0, %c0_0] : memref<64x34xf32, #tpu.memory_space<vmem>>, vector<64x34xf32>
    %c0_1 = arith.constant 0 : index
    %c0_2 = arith.constant 0 : index
    %1 = vector.load %arg3[%c0_1, %c0_2] : memref<34x512xf32, #tpu.memory_space<vmem>>, vector<34x512xf32>
    %cst = arith.constant dense<0.000000e+00> : vector<64x512xf32>
    %2 = tpu.matmul %0, %1, %cst {dimension_numbers = #tpu.dot_dimension_numbers<[1], [0], [0], [1], [0, 0, 1, 1], [], []>} : vector<64x34xf32>, vector<34x512xf32>, vector<64x512xf32> -> vector<64x512xf32>
    %c0_3 = arith.constant 0 : index
    %c0_4 = arith.constant 0 : index
    %3 = vector.load %arg5[%c0_3, %c0_4] : memref<1x512xf32, #tpu.memory_space<vmem>>, vector<1x512xf32>
    %4 = vector.broadcast %3 : vector<1x512xf32> to vector<64x512xf32>
    %5 = arith.addf %2, %4 : vector<64x512xf32>
    %c0_5 = arith.constant 0 : index
    %c0_6 = arith.constant 0 : index
    %6 = vector.load %arg4[%c0_5, %c0_6] : memref<128x512xf32, #tpu.memory_space<vmem>>, vector<128x512xf32>
    %c0_7 = arith.constant 0 : index
    %c0_8 = arith.constant 0 : index
    %7 = vector.load %arg2[%c0_7, %c0_8] : memref<8x1xi32, #tpu.memory_space<vmem>>, vector<8x1xi32>
    %cst_9 = arith.constant 0.000000e+00 : f32
    %8 = vector.broadcast %cst_9 : f32 to vector<8x128xf32>
    %cst_10 = arith.constant 0.000000e+00 : f32
    %9 = vector.broadcast %cst_10 : f32 to vector<8x128xf32>
    %10 = vector.extract_strided_slice %5 {offsets = [0, 0], sizes = [8, 512], strides = [1, 1]} : vector<64x512xf32> to vector<8x512xf32>
    %cst_11 = arith.constant dense<0.000000e+00> : vector<8x512xf32>
    %11 = tpu.matmul %8, %6, %cst_11 {dimension_numbers = #tpu.dot_dimension_numbers<[1], [0], [0], [1], [0, 0, 1, 1], [], []>} : vector<8x128xf32>, vector<128x512xf32>, vector<8x512xf32> -> vector<8x512xf32>
    %12 = arith.addf %10, %11 : vector<8x512xf32>
    %13 = vector.extract_strided_slice %12 {offsets = [0, 0], sizes = [8, 128], strides = [1, 1]} : vector<8x512xf32> to vector<8x128xf32>
    %14 = arith.negf %13 : vector<8x128xf32>
    %15 = math.exp %14 : vector<8x128xf32>
    %cst_12 = arith.constant 1.000000e+00 : f32
    %16 = vector.broadcast %cst_12 : f32 to vector<8x128xf32>
    %17 = arith.addf %16, %15 : vector<8x128xf32>
    %18 = arith.divf %16, %17 : vector<8x128xf32>
    %19 = vector.extract_strided_slice %12 {offsets = [0, 128], sizes = [8, 128], strides = [1, 1]} : vector<8x512xf32> to vector<8x128xf32>
    %20 = arith.negf %19 : vector<8x128xf32>
    %21 = math.exp %20 : vector<8x128xf32>
    %cst_13 = arith.constant 1.000000e+00 : f32
    %22 = vector.broadcast %cst_13 : f32 to vector<8x128xf32>
    %23 = arith.addf %22, %21 : vector<8x128xf32>
    %24 = arith.divf %22, %23 : vector<8x128xf32>
    %25 = vector.extract_strided_slice %12 {offsets = [0, 256], sizes = [8, 128], strides = [1, 1]} : vector<8x512xf32> to vector<8x128xf32>
    %26 = math.tanh %25 : vector<8x128xf32>
    %27 = vector.extract_strided_slice %12 {offsets = [0, 384], sizes = [8, 128], strides = [1, 1]} : vector<8x512xf32> to vector<8x128xf32>
    %28 = arith.negf %27 : vector<8x128xf32>
    %29 = math.exp %28 : vector<8x128xf32>
    %cst_14 = arith.constant 1.000000e+00 : f32
    %30 = vector.broadcast %cst_14 : f32 to vector<8x128xf32>
    %31 = arith.addf %30, %29 : vector<8x128xf32>
    %32 = arith.divf %30, %31 : vector<8x128xf32>
    %33 = arith.mulf %24, %9 : vector<8x128xf32>
    %34 = arith.mulf %18, %26 : vector<8x128xf32>
    %35 = arith.addf %33, %34 : vector<8x128xf32>
    %36 = math.tanh %35 : vector<8x128xf32>
    %37 = arith.mulf %32, %36 : vector<8x128xf32>
    %c0_i32 = arith.constant 0 : i32
    %38 = vector.broadcast %c0_i32 : i32 to vector<8x1xi32>
    %39 = arith.cmpi sgt, %7, %38 : vector<8x1xi32>
    %40 = vector.shape_cast %39 : vector<8x1xi1> to vector<8x1xi1>
    %41 = vector.broadcast %40 : vector<8x1xi1> to vector<8x128xi1>
    %42 = arith.select %41, %37, %8 : vector<8x128xi1>, vector<8x128xf32>
    %43 = vector.shape_cast %39 : vector<8x1xi1> to vector<8x1xi1>
    %44 = vector.broadcast %43 : vector<8x1xi1> to vector<8x128xi1>
    %45 = arith.select %44, %35, %9 : vector<8x128xi1>, vector<8x128xf32>
    %46 = vector.extract_strided_slice %5 {offsets = [8, 0], sizes = [8, 512], strides = [1, 1]} : vector<64x512xf32> to vector<8x512xf32>
    %cst_15 = arith.constant dense<0.000000e+00> : vector<8x512xf32>
    %47 = tpu.matmul %42, %6, %cst_15 {dimension_numbers = #tpu.dot_dimension_numbers<[1], [0], [0], [1], [0, 0, 1, 1], [], []>} : vector<8x128xf32>, vector<128x512xf32>, vector<8x512xf32> -> vector<8x512xf32>
    %48 = arith.addf %46, %47 : vector<8x512xf32>
    %49 = vector.extract_strided_slice %48 {offsets = [0, 0], sizes = [8, 128], strides = [1, 1]} : vector<8x512xf32> to vector<8x128xf32>
    %50 = arith.negf %49 : vector<8x128xf32>
    %51 = math.exp %50 : vector<8x128xf32>
    %cst_16 = arith.constant 1.000000e+00 : f32
    %52 = vector.broadcast %cst_16 : f32 to vector<8x128xf32>
    %53 = arith.addf %52, %51 : vector<8x128xf32>
    %54 = arith.divf %52, %53 : vector<8x128xf32>
    %55 = vector.extract_strided_slice %48 {offsets = [0, 128], sizes = [8, 128], strides = [1, 1]} : vector<8x512xf32> to vector<8x128xf32>
    %56 = arith.negf %55 : vector<8x128xf32>
    %57 = math.exp %56 : vector<8x128xf32>
    %cst_17 = arith.constant 1.000000e+00 : f32
    %58 = vector.broadcast %cst_17 : f32 to vector<8x128xf32>
    %59 = arith.addf %58, %57 : vector<8x128xf32>
    %60 = arith.divf %58, %59 : vector<8x128xf32>
    %61 = vector.extract_strided_slice %48 {offsets = [0, 256], sizes = [8, 128], strides = [1, 1]} : vector<8x512xf32> to vector<8x128xf32>
    %62 = math.tanh %61 : vector<8x128xf32>
    %63 = vector.extract_strided_slice %48 {offsets = [0, 384], sizes = [8, 128], strides = [1, 1]} : vector<8x512xf32> to vector<8x128xf32>
    %64 = arith.negf %63 : vector<8x128xf32>
    %65 = math.exp %64 : vector<8x128xf32>
    %cst_18 = arith.constant 1.000000e+00 : f32
    %66 = vector.broadcast %cst_18 : f32 to vector<8x128xf32>
    %67 = arith.addf %66, %65 : vector<8x128xf32>
    %68 = arith.divf %66, %67 : vector<8x128xf32>
    %69 = arith.mulf %60, %45 : vector<8x128xf32>
    %70 = arith.mulf %54, %62 : vector<8x128xf32>
    %71 = arith.addf %69, %70 : vector<8x128xf32>
    %72 = math.tanh %71 : vector<8x128xf32>
    %73 = arith.mulf %68, %72 : vector<8x128xf32>
    %c1_i32 = arith.constant 1 : i32
    %74 = vector.broadcast %c1_i32 : i32 to vector<8x1xi32>
    %75 = arith.cmpi sgt, %7, %74 : vector<8x1xi32>
    %76 = vector.shape_cast %75 : vector<8x1xi1> to vector<8x1xi1>
    %77 = vector.broadcast %76 : vector<8x1xi1> to vector<8x128xi1>
    %78 = arith.select %77, %73, %42 : vector<8x128xi1>, vector<8x128xf32>
    %79 = vector.shape_cast %75 : vector<8x1xi1> to vector<8x1xi1>
    %80 = vector.broadcast %79 : vector<8x1xi1> to vector<8x128xi1>
    %81 = arith.select %80, %71, %45 : vector<8x128xi1>, vector<8x128xf32>
    %82 = vector.extract_strided_slice %5 {offsets = [16, 0], sizes = [8, 512], strides = [1, 1]} : vector<64x512xf32> to vector<8x512xf32>
    %cst_19 = arith.constant dense<0.000000e+00> : vector<8x512xf32>
    %83 = tpu.matmul %78, %6, %cst_19 {dimension_numbers = #tpu.dot_dimension_numbers<[1], [0], [0], [1], [0, 0, 1, 1], [], []>} : vector<8x128xf32>, vector<128x512xf32>, vector<8x512xf32> -> vector<8x512xf32>
    %84 = arith.addf %82, %83 : vector<8x512xf32>
    %85 = vector.extract_strided_slice %84 {offsets = [0, 0], sizes = [8, 128], strides = [1, 1]} : vector<8x512xf32> to vector<8x128xf32>
    %86 = arith.negf %85 : vector<8x128xf32>
    %87 = math.exp %86 : vector<8x128xf32>
    %cst_20 = arith.constant 1.000000e+00 : f32
    %88 = vector.broadcast %cst_20 : f32 to vector<8x128xf32>
    %89 = arith.addf %88, %87 : vector<8x128xf32>
    %90 = arith.divf %88, %89 : vector<8x128xf32>
    %91 = vector.extract_strided_slice %84 {offsets = [0, 128], sizes = [8, 128], strides = [1, 1]} : vector<8x512xf32> to vector<8x128xf32>
    %92 = arith.negf %91 : vector<8x128xf32>
    %93 = math.exp %92 : vector<8x128xf32>
    %cst_21 = arith.constant 1.000000e+00 : f32
    %94 = vector.broadcast %cst_21 : f32 to vector<8x128xf32>
    %95 = arith.addf %94, %93 : vector<8x128xf32>
    %96 = arith.divf %94, %95 : vector<8x128xf32>
    %97 = vector.extract_strided_slice %84 {offsets = [0, 256], sizes = [8, 128], strides = [1, 1]} : vector<8x512xf32> to vector<8x128xf32>
    %98 = math.tanh %97 : vector<8x128xf32>
    %99 = vector.extract_strided_slice %84 {offsets = [0, 384], sizes = [8, 128], strides = [1, 1]} : vector<8x512xf32> to vector<8x128xf32>
    %100 = arith.negf %99 : vector<8x128xf32>
    %101 = math.exp %100 : vector<8x128xf32>
    %cst_22 = arith.constant 1.000000e+00 : f32
    %102 = vector.broadcast %cst_22 : f32 to vector<8x128xf32>
    %103 = arith.addf %102, %101 : vector<8x128xf32>
    %104 = arith.divf %102, %103 : vector<8x128xf32>
    %105 = arith.mulf %96, %81 : vector<8x128xf32>
    %106 = arith.mulf %90, %98 : vector<8x128xf32>
    %107 = arith.addf %105, %106 : vector<8x128xf32>
    %108 = math.tanh %107 : vector<8x128xf32>
    %109 = arith.mulf %104, %108 : vector<8x128xf32>
    %c2_i32 = arith.constant 2 : i32
    %110 = vector.broadcast %c2_i32 : i32 to vector<8x1xi32>
    %111 = arith.cmpi sgt, %7, %110 : vector<8x1xi32>
    %112 = vector.shape_cast %111 : vector<8x1xi1> to vector<8x1xi1>
    %113 = vector.broadcast %112 : vector<8x1xi1> to vector<8x128xi1>
    %114 = arith.select %113, %109, %78 : vector<8x128xi1>, vector<8x128xf32>
    %115 = vector.shape_cast %111 : vector<8x1xi1> to vector<8x1xi1>
    %116 = vector.broadcast %115 : vector<8x1xi1> to vector<8x128xi1>
    %117 = arith.select %116, %107, %81 : vector<8x128xi1>, vector<8x128xf32>
    %118 = vector.extract_strided_slice %5 {offsets = [24, 0], sizes = [8, 512], strides = [1, 1]} : vector<64x512xf32> to vector<8x512xf32>
    %cst_23 = arith.constant dense<0.000000e+00> : vector<8x512xf32>
    %119 = tpu.matmul %114, %6, %cst_23 {dimension_numbers = #tpu.dot_dimension_numbers<[1], [0], [0], [1], [0, 0, 1, 1], [], []>} : vector<8x128xf32>, vector<128x512xf32>, vector<8x512xf32> -> vector<8x512xf32>
    %120 = arith.addf %118, %119 : vector<8x512xf32>
    %121 = vector.extract_strided_slice %120 {offsets = [0, 0], sizes = [8, 128], strides = [1, 1]} : vector<8x512xf32> to vector<8x128xf32>
    %122 = arith.negf %121 : vector<8x128xf32>
    %123 = math.exp %122 : vector<8x128xf32>
    %cst_24 = arith.constant 1.000000e+00 : f32
    %124 = vector.broadcast %cst_24 : f32 to vector<8x128xf32>
    %125 = arith.addf %124, %123 : vector<8x128xf32>
    %126 = arith.divf %124, %125 : vector<8x128xf32>
    %127 = vector.extract_strided_slice %120 {offsets = [0, 128], sizes = [8, 128], strides = [1, 1]} : vector<8x512xf32> to vector<8x128xf32>
    %128 = arith.negf %127 : vector<8x128xf32>
    %129 = math.exp %128 : vector<8x128xf32>
    %cst_25 = arith.constant 1.000000e+00 : f32
    %130 = vector.broadcast %cst_25 : f32 to vector<8x128xf32>
    %131 = arith.addf %130, %129 : vector<8x128xf32>
    %132 = arith.divf %130, %131 : vector<8x128xf32>
    %133 = vector.extract_strided_slice %120 {offsets = [0, 256], sizes = [8, 128], strides = [1, 1]} : vector<8x512xf32> to vector<8x128xf32>
    %134 = math.tanh %133 : vector<8x128xf32>
    %135 = vector.extract_strided_slice %120 {offsets = [0, 384], sizes = [8, 128], strides = [1, 1]} : vector<8x512xf32> to vector<8x128xf32>
    %136 = arith.negf %135 : vector<8x128xf32>
    %137 = math.exp %136 : vector<8x128xf32>
    %cst_26 = arith.constant 1.000000e+00 : f32
    %138 = vector.broadcast %cst_26 : f32 to vector<8x128xf32>
    %139 = arith.addf %138, %137 : vector<8x128xf32>
    %140 = arith.divf %138, %139 : vector<8x128xf32>
    %141 = arith.mulf %132, %117 : vector<8x128xf32>
    %142 = arith.mulf %126, %134 : vector<8x128xf32>
    %143 = arith.addf %141, %142 : vector<8x128xf32>
    %144 = math.tanh %143 : vector<8x128xf32>
    %145 = arith.mulf %140, %144 : vector<8x128xf32>
    %c3_i32 = arith.constant 3 : i32
    %146 = vector.broadcast %c3_i32 : i32 to vector<8x1xi32>
    %147 = arith.cmpi sgt, %7, %146 : vector<8x1xi32>
    %148 = vector.shape_cast %147 : vector<8x1xi1> to vector<8x1xi1>
    %149 = vector.broadcast %148 : vector<8x1xi1> to vector<8x128xi1>
    %150 = arith.select %149, %145, %114 : vector<8x128xi1>, vector<8x128xf32>
    %151 = vector.shape_cast %147 : vector<8x1xi1> to vector<8x1xi1>
    %152 = vector.broadcast %151 : vector<8x1xi1> to vector<8x128xi1>
    %153 = arith.select %152, %143, %117 : vector<8x128xi1>, vector<8x128xf32>
    %154 = vector.extract_strided_slice %5 {offsets = [32, 0], sizes = [8, 512], strides = [1, 1]} : vector<64x512xf32> to vector<8x512xf32>
    %cst_27 = arith.constant dense<0.000000e+00> : vector<8x512xf32>
    %155 = tpu.matmul %150, %6, %cst_27 {dimension_numbers = #tpu.dot_dimension_numbers<[1], [0], [0], [1], [0, 0, 1, 1], [], []>} : vector<8x128xf32>, vector<128x512xf32>, vector<8x512xf32> -> vector<8x512xf32>
    %156 = arith.addf %154, %155 : vector<8x512xf32>
    %157 = vector.extract_strided_slice %156 {offsets = [0, 0], sizes = [8, 128], strides = [1, 1]} : vector<8x512xf32> to vector<8x128xf32>
    %158 = arith.negf %157 : vector<8x128xf32>
    %159 = math.exp %158 : vector<8x128xf32>
    %cst_28 = arith.constant 1.000000e+00 : f32
    %160 = vector.broadcast %cst_28 : f32 to vector<8x128xf32>
    %161 = arith.addf %160, %159 : vector<8x128xf32>
    %162 = arith.divf %160, %161 : vector<8x128xf32>
    %163 = vector.extract_strided_slice %156 {offsets = [0, 128], sizes = [8, 128], strides = [1, 1]} : vector<8x512xf32> to vector<8x128xf32>
    %164 = arith.negf %163 : vector<8x128xf32>
    %165 = math.exp %164 : vector<8x128xf32>
    %cst_29 = arith.constant 1.000000e+00 : f32
    %166 = vector.broadcast %cst_29 : f32 to vector<8x128xf32>
    %167 = arith.addf %166, %165 : vector<8x128xf32>
    %168 = arith.divf %166, %167 : vector<8x128xf32>
    %169 = vector.extract_strided_slice %156 {offsets = [0, 256], sizes = [8, 128], strides = [1, 1]} : vector<8x512xf32> to vector<8x128xf32>
    %170 = math.tanh %169 : vector<8x128xf32>
    %171 = vector.extract_strided_slice %156 {offsets = [0, 384], sizes = [8, 128], strides = [1, 1]} : vector<8x512xf32> to vector<8x128xf32>
    %172 = arith.negf %171 : vector<8x128xf32>
    %173 = math.exp %172 : vector<8x128xf32>
    %cst_30 = arith.constant 1.000000e+00 : f32
    %174 = vector.broadcast %cst_30 : f32 to vector<8x128xf32>
    %175 = arith.addf %174, %173 : vector<8x128xf32>
    %176 = arith.divf %174, %175 : vector<8x128xf32>
    %177 = arith.mulf %168, %153 : vector<8x128xf32>
    %178 = arith.mulf %162, %170 : vector<8x128xf32>
    %179 = arith.addf %177, %178 : vector<8x128xf32>
    %180 = math.tanh %179 : vector<8x128xf32>
    %181 = arith.mulf %176, %180 : vector<8x128xf32>
    %c4_i32 = arith.constant 4 : i32
    %182 = vector.broadcast %c4_i32 : i32 to vector<8x1xi32>
    %183 = arith.cmpi sgt, %7, %182 : vector<8x1xi32>
    %184 = vector.shape_cast %183 : vector<8x1xi1> to vector<8x1xi1>
    %185 = vector.broadcast %184 : vector<8x1xi1> to vector<8x128xi1>
    %186 = arith.select %185, %181, %150 : vector<8x128xi1>, vector<8x128xf32>
    %187 = vector.shape_cast %183 : vector<8x1xi1> to vector<8x1xi1>
    %188 = vector.broadcast %187 : vector<8x1xi1> to vector<8x128xi1>
    %189 = arith.select %188, %179, %153 : vector<8x128xi1>, vector<8x128xf32>
    %190 = vector.extract_strided_slice %5 {offsets = [40, 0], sizes = [8, 512], strides = [1, 1]} : vector<64x512xf32> to vector<8x512xf32>
    %cst_31 = arith.constant dense<0.000000e+00> : vector<8x512xf32>
    %191 = tpu.matmul %186, %6, %cst_31 {dimension_numbers = #tpu.dot_dimension_numbers<[1], [0], [0], [1], [0, 0, 1, 1], [], []>} : vector<8x128xf32>, vector<128x512xf32>, vector<8x512xf32> -> vector<8x512xf32>
    %192 = arith.addf %190, %191 : vector<8x512xf32>
    %193 = vector.extract_strided_slice %192 {offsets = [0, 0], sizes = [8, 128], strides = [1, 1]} : vector<8x512xf32> to vector<8x128xf32>
    %194 = arith.negf %193 : vector<8x128xf32>
    %195 = math.exp %194 : vector<8x128xf32>
    %cst_32 = arith.constant 1.000000e+00 : f32
    %196 = vector.broadcast %cst_32 : f32 to vector<8x128xf32>
    %197 = arith.addf %196, %195 : vector<8x128xf32>
    %198 = arith.divf %196, %197 : vector<8x128xf32>
    %199 = vector.extract_strided_slice %192 {offsets = [0, 128], sizes = [8, 128], strides = [1, 1]} : vector<8x512xf32> to vector<8x128xf32>
    %200 = arith.negf %199 : vector<8x128xf32>
    %201 = math.exp %200 : vector<8x128xf32>
    %cst_33 = arith.constant 1.000000e+00 : f32
    %202 = vector.broadcast %cst_33 : f32 to vector<8x128xf32>
    %203 = arith.addf %202, %201 : vector<8x128xf32>
    %204 = arith.divf %202, %203 : vector<8x128xf32>
    %205 = vector.extract_strided_slice %192 {offsets = [0, 256], sizes = [8, 128], strides = [1, 1]} : vector<8x512xf32> to vector<8x128xf32>
    %206 = math.tanh %205 : vector<8x128xf32>
    %207 = vector.extract_strided_slice %192 {offsets = [0, 384], sizes = [8, 128], strides = [1, 1]} : vector<8x512xf32> to vector<8x128xf32>
    %208 = arith.negf %207 : vector<8x128xf32>
    %209 = math.exp %208 : vector<8x128xf32>
    %cst_34 = arith.constant 1.000000e+00 : f32
    %210 = vector.broadcast %cst_34 : f32 to vector<8x128xf32>
    %211 = arith.addf %210, %209 : vector<8x128xf32>
    %212 = arith.divf %210, %211 : vector<8x128xf32>
    %213 = arith.mulf %204, %189 : vector<8x128xf32>
    %214 = arith.mulf %198, %206 : vector<8x128xf32>
    %215 = arith.addf %213, %214 : vector<8x128xf32>
    %216 = math.tanh %215 : vector<8x128xf32>
    %217 = arith.mulf %212, %216 : vector<8x128xf32>
    %c5_i32 = arith.constant 5 : i32
    %218 = vector.broadcast %c5_i32 : i32 to vector<8x1xi32>
    %219 = arith.cmpi sgt, %7, %218 : vector<8x1xi32>
    %220 = vector.shape_cast %219 : vector<8x1xi1> to vector<8x1xi1>
    %221 = vector.broadcast %220 : vector<8x1xi1> to vector<8x128xi1>
    %222 = arith.select %221, %217, %186 : vector<8x128xi1>, vector<8x128xf32>
    %223 = vector.shape_cast %219 : vector<8x1xi1> to vector<8x1xi1>
    %224 = vector.broadcast %223 : vector<8x1xi1> to vector<8x128xi1>
    %225 = arith.select %224, %215, %189 : vector<8x128xi1>, vector<8x128xf32>
    %226 = vector.extract_strided_slice %5 {offsets = [48, 0], sizes = [8, 512], strides = [1, 1]} : vector<64x512xf32> to vector<8x512xf32>
    %cst_35 = arith.constant dense<0.000000e+00> : vector<8x512xf32>
    %227 = tpu.matmul %222, %6, %cst_35 {dimension_numbers = #tpu.dot_dimension_numbers<[1], [0], [0], [1], [0, 0, 1, 1], [], []>} : vector<8x128xf32>, vector<128x512xf32>, vector<8x512xf32> -> vector<8x512xf32>
    %228 = arith.addf %226, %227 : vector<8x512xf32>
    %229 = vector.extract_strided_slice %228 {offsets = [0, 0], sizes = [8, 128], strides = [1, 1]} : vector<8x512xf32> to vector<8x128xf32>
    %230 = arith.negf %229 : vector<8x128xf32>
    %231 = math.exp %230 : vector<8x128xf32>
    %cst_36 = arith.constant 1.000000e+00 : f32
    %232 = vector.broadcast %cst_36 : f32 to vector<8x128xf32>
    %233 = arith.addf %232, %231 : vector<8x128xf32>
    %234 = arith.divf %232, %233 : vector<8x128xf32>
    %235 = vector.extract_strided_slice %228 {offsets = [0, 128], sizes = [8, 128], strides = [1, 1]} : vector<8x512xf32> to vector<8x128xf32>
    %236 = arith.negf %235 : vector<8x128xf32>
    %237 = math.exp %236 : vector<8x128xf32>
    %cst_37 = arith.constant 1.000000e+00 : f32
    %238 = vector.broadcast %cst_37 : f32 to vector<8x128xf32>
    %239 = arith.addf %238, %237 : vector<8x128xf32>
    %240 = arith.divf %238, %239 : vector<8x128xf32>
    %241 = vector.extract_strided_slice %228 {offsets = [0, 256], sizes = [8, 128], strides = [1, 1]} : vector<8x512xf32> to vector<8x128xf32>
    %242 = math.tanh %241 : vector<8x128xf32>
    %243 = vector.extract_strided_slice %228 {offsets = [0, 384], sizes = [8, 128], strides = [1, 1]} : vector<8x512xf32> to vector<8x128xf32>
    %244 = arith.negf %243 : vector<8x128xf32>
    %245 = math.exp %244 : vector<8x128xf32>
    %cst_38 = arith.constant 1.000000e+00 : f32
    %246 = vector.broadcast %cst_38 : f32 to vector<8x128xf32>
    %247 = arith.addf %246, %245 : vector<8x128xf32>
    %248 = arith.divf %246, %247 : vector<8x128xf32>
    %249 = arith.mulf %240, %225 : vector<8x128xf32>
    %250 = arith.mulf %234, %242 : vector<8x128xf32>
    %251 = arith.addf %249, %250 : vector<8x128xf32>
    %252 = math.tanh %251 : vector<8x128xf32>
    %253 = arith.mulf %248, %252 : vector<8x128xf32>
    %c6_i32 = arith.constant 6 : i32
    %254 = vector.broadcast %c6_i32 : i32 to vector<8x1xi32>
    %255 = arith.cmpi sgt, %7, %254 : vector<8x1xi32>
    %256 = vector.shape_cast %255 : vector<8x1xi1> to vector<8x1xi1>
    %257 = vector.broadcast %256 : vector<8x1xi1> to vector<8x128xi1>
    %258 = arith.select %257, %253, %222 : vector<8x128xi1>, vector<8x128xf32>
    %259 = vector.shape_cast %255 : vector<8x1xi1> to vector<8x1xi1>
    %260 = vector.broadcast %259 : vector<8x1xi1> to vector<8x128xi1>
    %261 = arith.select %260, %251, %225 : vector<8x128xi1>, vector<8x128xf32>
    %262 = vector.extract_strided_slice %5 {offsets = [56, 0], sizes = [8, 512], strides = [1, 1]} : vector<64x512xf32> to vector<8x512xf32>
    %cst_39 = arith.constant dense<0.000000e+00> : vector<8x512xf32>
    %263 = tpu.matmul %258, %6, %cst_39 {dimension_numbers = #tpu.dot_dimension_numbers<[1], [0], [0], [1], [0, 0, 1, 1], [], []>} : vector<8x128xf32>, vector<128x512xf32>, vector<8x512xf32> -> vector<8x512xf32>
    %264 = arith.addf %262, %263 : vector<8x512xf32>
    %265 = vector.extract_strided_slice %264 {offsets = [0, 0], sizes = [8, 128], strides = [1, 1]} : vector<8x512xf32> to vector<8x128xf32>
    %266 = arith.negf %265 : vector<8x128xf32>
    %267 = math.exp %266 : vector<8x128xf32>
    %cst_40 = arith.constant 1.000000e+00 : f32
    %268 = vector.broadcast %cst_40 : f32 to vector<8x128xf32>
    %269 = arith.addf %268, %267 : vector<8x128xf32>
    %270 = arith.divf %268, %269 : vector<8x128xf32>
    %271 = vector.extract_strided_slice %264 {offsets = [0, 128], sizes = [8, 128], strides = [1, 1]} : vector<8x512xf32> to vector<8x128xf32>
    %272 = arith.negf %271 : vector<8x128xf32>
    %273 = math.exp %272 : vector<8x128xf32>
    %cst_41 = arith.constant 1.000000e+00 : f32
    %274 = vector.broadcast %cst_41 : f32 to vector<8x128xf32>
    %275 = arith.addf %274, %273 : vector<8x128xf32>
    %276 = arith.divf %274, %275 : vector<8x128xf32>
    %277 = vector.extract_strided_slice %264 {offsets = [0, 256], sizes = [8, 128], strides = [1, 1]} : vector<8x512xf32> to vector<8x128xf32>
    %278 = math.tanh %277 : vector<8x128xf32>
    %279 = vector.extract_strided_slice %264 {offsets = [0, 384], sizes = [8, 128], strides = [1, 1]} : vector<8x512xf32> to vector<8x128xf32>
    %280 = arith.negf %279 : vector<8x128xf32>
    %281 = math.exp %280 : vector<8x128xf32>
    %cst_42 = arith.constant 1.000000e+00 : f32
    %282 = vector.broadcast %cst_42 : f32 to vector<8x128xf32>
    %283 = arith.addf %282, %281 : vector<8x128xf32>
    %284 = arith.divf %282, %283 : vector<8x128xf32>
    %285 = arith.mulf %276, %261 : vector<8x128xf32>
    %286 = arith.mulf %270, %278 : vector<8x128xf32>
    %287 = arith.addf %285, %286 : vector<8x128xf32>
    %288 = math.tanh %287 : vector<8x128xf32>
    %289 = arith.mulf %284, %288 : vector<8x128xf32>
    %c7_i32 = arith.constant 7 : i32
    %290 = vector.broadcast %c7_i32 : i32 to vector<8x1xi32>
    %291 = arith.cmpi sgt, %7, %290 : vector<8x1xi32>
    %292 = vector.shape_cast %291 : vector<8x1xi1> to vector<8x1xi1>
    %293 = vector.broadcast %292 : vector<8x1xi1> to vector<8x128xi1>
    %294 = arith.select %293, %289, %258 : vector<8x128xi1>, vector<8x128xf32>
    %c0_43 = arith.constant 0 : index
    %c0_44 = arith.constant 0 : index
    %295 = vector.load %arg6[%c0_43, %c0_44] : memref<1x128xf32, #tpu.memory_space<vmem>>, vector<1x128xf32>
    %296 = vector.broadcast %295 : vector<1x128xf32> to vector<8x128xf32>
    %297 = arith.mulf %294, %296 : vector<8x128xf32>
    %cst_45 = arith.constant dense<0.000000e+00> : vector<8xf32>
    %298 = vector.multi_reduction <add>, %297, %cst_45 [1] : vector<8x128xf32> to vector<8xf32>
    %299 = vector.shape_cast %298 : vector<8xf32> to vector<8x1xf32>
    %c0_46 = arith.constant 0 : index
    %c0_47 = arith.constant 0 : index
    %300 = vector.load %arg7[%c0_46, %c0_47] : memref<1x1xf32, #tpu.memory_space<vmem>>, vector<1x1xf32>
    %301 = vector.broadcast %300 : vector<1x1xf32> to vector<8x1xf32>
    %302 = arith.addf %299, %301 : vector<8x1xf32>
    %303 = arith.negf %302 : vector<8x1xf32>
    %304 = math.exp %303 : vector<8x1xf32>
    %cst_48 = arith.constant 1.000000e+00 : f32
    %305 = vector.broadcast %cst_48 : f32 to vector<8x1xf32>
    %306 = arith.addf %305, %304 : vector<8x1xf32>
    %307 = arith.divf %305, %306 : vector<8x1xf32>
    %c0_49 = arith.constant 0 : index
    %c0_50 = arith.constant 0 : index
    %308 = vector.load %arg8[%c0_49, %c0_50] : memref<8x1xf32, #tpu.memory_space<vmem>>, vector<8x1xf32>
    tpu.vector_store %arg8[%c0_49, %c0_50], %307 {strides = array<i32>} : memref<8x1xf32, #tpu.memory_space<vmem>>, vector<8x1xf32>,
    return
  }
  func.func @transform_0(%arg0: i32) -> (i32, i32) {
    %c0_i32 = arith.constant 0 : i32
    %c0_i32_0 = arith.constant 0 : i32
    %c0_i32_1 = arith.constant 0 : i32
    return %c0_i32, %c0_i32_0 : i32, i32
  }
  func.func @transform_1(%arg0: i32) -> (i32, i32) {
    %c0_i32 = arith.constant 0 : i32
    %c0_i32_0 = arith.constant 0 : i32
    %c0_i32_1 = arith.constant 0 : i32
    return %c0_i32, %c0_i32_0 : i32, i32
  }
  func.func @transform_2(%arg0: i32) -> (i32, i32) {
    %c0_i32 = arith.constant 0 : i32
    %c0_i32_0 = arith.constant 0 : i32
    %c0_i32_1 = arith.constant 0 : i32
    return %c0_i32, %c0_i32_0 : i32, i32
  }
  func.func @transform_3(%arg0: i32) -> (i32, i32) {
    %c0_i32 = arith.constant 0 : i32
    %c0_i32_0 = arith.constant 0 : i32
    %c0_i32_1 = arith.constant 0 : i32
    return %c0_i32, %c0_i32_0 : i32, i32
  }
  func.func @transform_4(%arg0: i32) -> (i32, i32) {
    %c0_i32 = arith.constant 0 : i32
    %c0_i32_0 = arith.constant 0 : i32
    %c0_i32_1 = arith.constant 0 : i32
    return %c0_i32, %c0_i32_0 : i32, i32
  }
  func.func @transform_5(%arg0: i32) -> (i32, i32) {
    %c0_i32 = arith.constant 0 : i32
    %c0_i32_0 = arith.constant 0 : i32
    %c0_i32_1 = arith.constant 0 : i32
    return %c0_i32, %c0_i32_0 : i32, i32
  }
  func.func @transform_6(%arg0: i32) -> (i32, i32) {
    %c0_i32 = arith.constant 0 : i32
    %c0_i32_0 = arith.constant 0 : i32
    %c0_i32_1 = arith.constant 0 : i32
    return %c0_i32, %c0_i32_0 : i32, i32
  }
  func.func @transform_7(%arg0: i32) -> (i32, i32) {
    %c0_i32 = arith.constant 0 : i32
    %c0_i32_0 = arith.constant 0 : i32
    %c0_i32_1 = arith.constant 0 : i32
    return %c0_i32, %c0_i32_0 : i32, i32
  }
}

</mosaic_0001>

<llo_original>
// kernel: tpu_custom_call.1
$region0: #{tpu_custom_call.1}
  #allocation0 [shape = 'u32[]', space=smem, size = 0x4, offset = 0x4, fixed_abs, tag = 'smem constant byte address 0x4 - core index']
  #allocation1 [shape = 'u32[72,128]{1,0:T(1,128)}', space=vmem, size = 0x9000, scoped, tag = 'internal scratch']
  #allocation2 [shape = 'f32[1,1]{1,0:T(1,128)S(1)}', space=vmem, size = 0x200, scoped, tag = 'scoped memory for tpu_custom_call.1']
  %s0 = inlined_call_operand.vmem [shape: f32[64,34], index: 0, kind: input, shape index: {}]
  %s1 = inlined_call_operand.vmem [shape: s32[8,1], index: 1, kind: input, shape index: {}]
  %s2 = inlined_call_operand.hbm [shape: f32[34,512], index: 2, kind: input, shape index: {}]
  %s3 = inlined_call_operand.hbm [shape: f32[128,512], index: 3, kind: input, shape index: {}]
  %s4 = inlined_call_operand.vmem [shape: f32[1,512], index: 4, kind: input, shape index: {}]
  %s5 = inlined_call_operand.vmem [shape: f32[1,128], index: 5, kind: input, shape index: {}]
  %s6 = inlined_call_operand.<no memory space> [shape: f32[1,1], index: 6, kind: input, shape index: {}]
  %s7 = inlined_call_operand.vmem [shape: f32[8,1], index: 7, kind: output, shape index: {}]
  %s8 = sld [smem:[#allocation0]]
  $region46: #{tpu_custom_call.1} parent=0
    _
  %s10 = ssub.s32 1, %s8
  %s11 = scalar_select 0, %s10, %s8
  %v12 = vstv %s6
  %13 = vst [vmem:[#allocation2] sm:$0x1] %v12
  $region1: #{tpu_custom_call.1} parent=0
    #allocation3 [shape = 'u8[81920]{0}', space=vmem, size = 0x14000, scoped, tag = 'input window, operand 2, single buffered']
    #allocation4 [shape = 's32[1]{0}', space=sflag, size = 0x4, scoped, tag = 'scoped memory for tpu_custom_call.1']
    #allocation5 [shape = 'u8[262144]{0}', space=vmem, size = 0x40000, scoped, tag = 'input window, operand 3, single buffered']
    #allocation6 [shape = 's32[1]{0}', space=sflag, size = 0x4, scoped, tag = 'scoped memory for tpu_custom_call.1']
    %14 = vsyncpa [#allocation4], 0
    %15 = vsyncpa [#allocation6], 0
    // Predicated region
    $region2: #{tpu_custom_call.1} parent=1 // pred_check
      _
    $region3: #{tpu_custom_call.1} parent=1 // pred_check_branch
      %17 = sbr.rel (0) target = $region5
    $region4: #{tpu_custom_call.1} parent=1 // pred_region
      _
    $region5: #{tpu_custom_call.1} parent=1 // pred_fallthru
      _
    // Predicated region
    $region6: #{tpu_custom_call.1} parent=1 // pred_check
      _
    $region7: #{tpu_custom_call.1} parent=1 // pred_check_branch
      %19 = sbr.rel (0) target = $region9
    $region8: #{tpu_custom_call.1} parent=1 // pred_region
      _
    $region9: #{tpu_custom_call.1} parent=1 // pred_fallthru
      _
    // Predicated region
    $region10: #{tpu_custom_call.1} parent=1 // pred_check
      _
    $region11: #{tpu_custom_call.1} parent=1 // pred_check_branch
      %21 = sbr.rel (0) target = $region13
    $region12: #{tpu_custom_call.1} parent=1 // pred_region
      %23 = vsyncadd [#allocation4], 0
      %s24 = sshll.u32 %s2, 4
      %s25 = int_to_ptr.hbm [resolvable:$true] %s24
      %s26 = sshll.u32 [#allocation3], 4
      %s27 = int_to_ptr.vmem [resolvable:$true] %s26
      %32 = dma.hbm_to_vmem [thread:$0]  %s25, 2560, %s27, [#allocation4], 512, 512, 32
    $region13: #{tpu_custom_call.1} parent=1 // pred_fallthru
      _
    // Predicated region
    $region14: #{tpu_custom_call.1} parent=1 // pred_check
      _
    $region15: #{tpu_custom_call.1} parent=1 // pred_check_branch
      %34 = sbr.rel (0) target = $region17
    $region16: #{tpu_custom_call.1} parent=1 // pred_region
      %36 = vsyncadd [#allocation6], 0
      %s37 = sshll.u32 %s3, 4
      %s38 = int_to_ptr.hbm [resolvable:$true] %s37
      %s39 = sshll.u32 [#allocation5], 4
      %s40 = int_to_ptr.vmem [resolvable:$true] %s39
      %45 = dma.hbm_to_vmem [thread:$0]  %s38, 8192, %s40, [#allocation6], 512, 512, 32
    $region17: #{tpu_custom_call.1} parent=1 // pred_fallthru
      _
    // Predicated region
    $region18: #{tpu_custom_call.1} parent=1 // pred_check
      _
    $region19: #{tpu_custom_call.1} parent=1 // pred_check_branch
      %47 = sbr.rel (0) target = $region21
    $region20: #{tpu_custom_call.1} parent=1 // pred_region
      _
    $region21: #{tpu_custom_call.1} parent=1 // pred_fallthru
      _
    // Predicated region
    $region22: #{tpu_custom_call.1} parent=1 // pred_check
      _
    $region23: #{tpu_custom_call.1} parent=1 // pred_check_branch
      %49 = sbr.rel (0) target = $region25
    $region24: #{tpu_custom_call.1} parent=1 // pred_region
      _
    $region25: #{tpu_custom_call.1} parent=1 // pred_fallthru
      _
    // Predicated region
    $region26: #{tpu_custom_call.1} parent=1 // pred_check
      _
    $region27: #{tpu_custom_call.1} parent=1 // pred_check_branch
      %51 = sbr.rel (0) target = $region29
    $region28: #{tpu_custom_call.1} parent=1 // pred_region
      _
    $region29: #{tpu_custom_call.1} parent=1 // pred_fallthru
      _
    // Predicated region
    $region30: #{tpu_custom_call.1} parent=1 // pred_check
      _
    $region31: #{tpu_custom_call.1} parent=1 // pred_check_branch
      %53 = sbr.rel (0) target = $region33
    $region32: #{tpu_custom_call.1} parent=1 // pred_region
      %55 = dma.done [#allocation4], 2560
    $region33: #{tpu_custom_call.1} parent=1 // pred_fallthru
      _
    // Predicated region
    $region34: #{tpu_custom_call.1} parent=1 // pred_check
      _
    $region35: #{tpu_custom_call.1} parent=1 // pred_check_branch
      %57 = sbr.rel (0) target = $region37
    $region36: #{tpu_custom_call.1} parent=1 // pred_region
      %59 = dma.done [#allocation6], 8192
    $region37: #{tpu_custom_call.1} parent=1 // pred_fallthru
      _
    %v60 = vld [vmem:[%s0] sm:$0xff]
    %v61 = vld [vmem:[%s0 + $0x8] sm:$0xff]
    %v62 = vld [vmem:[%s0 + $0x10] sm:$0xff]
    %v63 = vld [vmem:[%s0 + $0x18] sm:$0xff]
    %v64 = vld [vmem:[%s0 + $0x20] sm:$0xff]
    %v65 = vld [vmem:[%s0 + $0x28] sm:$0xff]
    %v66 = vld [vmem:[%s0 + $0x30] sm:$0xff]
    %v67 = vld [vmem:[%s0 + $0x38] sm:$0xff]
    %v68 = vld [vmem:[#allocation3] sm:$0xff]
    %v69 = vld [vmem:[#allocation3 + $0x8] sm:$0xff]
    %v70 = vld [vmem:[#allocation3 + $0x10] sm:$0xff]
    %v71 = vld [vmem:[#allocation3 + $0x18] sm:$0xff]
    %v72 = vld [vmem:[#allocation3 + $0x20] sm:$0xff]
    %v73 = vld [vmem:[#allocation3 + $0x28] sm:$0xff]
    %v74 = vld [vmem:[#allocation3 + $0x30] sm:$0xff]
    %v75 = vld [vmem:[#allocation3 + $0x38] sm:$0xff]
    %v76 = vld [vmem:[#allocation3 + $0x40] sm:$0xff]
    %v77 = vld [vmem:[#allocation3 + $0x48] sm:$0xff]
    %v78 = vld [vmem:[#allocation3 + $0x50] sm:$0xff]
    %v79 = vld [vmem:[#allocation3 + $0x58] sm:$0xff]
    %v80 = vld [vmem:[#allocation3 + $0x60] sm:$0xff]
    %v81 = vld [vmem:[#allocation3 + $0x68] sm:$0xff]
    %v82 = vld [vmem:[#allocation3 + $0x70] sm:$0xff]
    %v83 = vld [vmem:[#allocation3 + $0x78] sm:$0xff]
    %v84 = vld [vmem:[#allocation3 + $0x80] sm:$0x3]
    %v85 = vld [vmem:[#allocation3 + $0x88] sm:$0x3]
    %v86 = vld [vmem:[#allocation3 + $0x90] sm:$0x3]
    %v87 = vld [vmem:[#allocation3 + $0x98] sm:$0x3]
    %v88 = vld [vmem:[%s4] sm:$0xf]
    %v90 = vperm.slane %v88, 0
    %v91 = vperm.slane %v88, 1
    %v92 = vperm.slane %v88, 2
    %v93 = vperm.slane %v88, 3
    %vm98 = vcmask 277504
    %v100 = vsel %vm98, %v60, 0
    %v103 = vsel %vm98, %v61, 0
    %v106 = vsel %vm98, %v62, 0
    %v109 = vsel %vm98, %v63, 0
    %v112 = vsel %vm98, %v64, 0
    %v115 = vsel %vm98, %v65, 0
    %v118 = vsel %vm98, %v66, 0
    %v121 = vsel %vm98, %v67, 0
    %vm123 = vcmask 1041408
    %v125 = vsel %vm123, %v84, 0
    %v128 = vsel %vm123, %v85, 0
    %v131 = vsel %vm123, %v86, 0
    %v134 = vsel %vm123, %v87, 0
    %136 = vmatpush.msra.mxu0 0.0
    %137 = vmatpush.msra.mxu0 0.0
    %138 = vmatpush.msra.mxu0 0.0
    %139 = vmatpush.msra.mxu0 0.0
    %140 = vmatpush.msra.mxu0 0.0
    %141 = vmatpush.msra.mxu0 0.0
    %142 = vmatpush.msra.mxu0 0.0
    %143 = vmatpush.msra.mxu0 0.0
    %144 = vmatpush.msra.mxu0 0.0
    %145 = vmatpush.msra.mxu0 0.0
    %146 = vmatpush.msra.mxu0 0.0
    %147 = vmatpush.msra.mxu0 %v125
    %148 = vmatpush.msra.mxu0 %v80
    %149 = vmatpush.msra.mxu0 %v76
    %150 = vmatpush.msra.mxu0 %v72
    %151 = vmatpush.msra.mxu0 %v68
    %152 = vmatmul.f32.gmra.mxu0 %v100
    %v153 = vpop.f32.mrf.mxu0
    %v154 = vadd.f32 %v90, %v153
    %155 = vmatmul.f32.gmra.mxu0 %v103
    %v156 = vpop.f32.mrf.mxu0
    %v157 = vadd.f32 %v90, %v156
    %158 = vmatmul.f32.gmra.mxu0 %v106
    %v159 = vpop.f32.mrf.mxu0
    %v160 = vadd.f32 %v90, %v159
    %161 = vmatmul.f32.gmra.mxu0 %v109
    %v162 = vpop.f32.mrf.mxu0
    %v163 = vadd.f32 %v90, %v162
    %164 = vmatmul.f32.gmra.mxu0 %v112
    %v165 = vpop.f32.mrf.mxu0
    %v166 = vadd.f32 %v90, %v165
    %167 = vmatmul.f32.gmra.mxu0 %v115
    %v168 = vpop.f32.mrf.mxu0
    %v169 = vadd.f32 %v90, %v168
    %170 = vmatmul.f32.gmra.mxu0 %v118
    %v171 = vpop.f32.mrf.mxu0
    %v172 = vadd.f32 %v90, %v171
    %173 = vmatmul.f32.gmra.mxu0 %v121
    %v174 = vpop.f32.mrf.mxu0
    %v175 = vadd.f32 %v90, %v174
    %176 = vdwg.mxu0
    %177 = vmatpush.msra.mxu0 0.0
    %178 = vmatpush.msra.mxu0 0.0
    %179 = vmatpush.msra.mxu0 0.0
    %180 = vmatpush.msra.mxu0 0.0
    %181 = vmatpush.msra.mxu0 0.0
    %182 = vmatpush.msra.mxu0 0.0
    %183 = vmatpush.msra.mxu0 0.0
    %184 = vmatpush.msra.mxu0 0.0
    %185 = vmatpush.msra.mxu0 0.0
    %186 = vmatpush.msra.mxu0 0.0
    %187 = vmatpush.msra.mxu0 0.0
    %188 = vmatpush.msra.mxu0 %v128
    %189 = vmatpush.msra.mxu0 %v81
    %190 = vmatpush.msra.mxu0 %v77
    %191 = vmatpush.msra.mxu0 %v73
    %192 = vmatpush.msra.mxu0 %v69
    %193 = vmatmul.f32.gmra.mxu0 %v100
    %v194 = vpop.f32.mrf.mxu0
    %v195 = vadd.f32 %v91, %v194
    %196 = vmatmul.f32.gmra.mxu0 %v103
    %v197 = vpop.f32.mrf.mxu0
    %v198 = vadd.f32 %v91, %v197
    %199 = vmatmul.f32.gmra.mxu0 %v106
    %v200 = vpop.f32.mrf.mxu0
    %v201 = vadd.f32 %v91, %v200
    %202 = vmatmul.f32.gmra.mxu0 %v109
    %v203 = vpop.f32.mrf.mxu0
    %v204 = vadd.f32 %v91, %v203
    %205 = vmatmul.f32.gmra.mxu0 %v112
    %v206 = vpop.f32.mrf.mxu0
    %v207 = vadd.f32 %v91, %v206
    %208 = vmatmul.f32.gmra.mxu0 %v115
    %v209 = vpop.f32.mrf.mxu0
    %v210 = vadd.f32 %v91, %v209
    %211 = vmatmul.f32.gmra.mxu0 %v118
    %v212 = vpop.f32.mrf.mxu0
    %v213 = vadd.f32 %v91, %v212
    %214 = vmatmul.f32.gmra.mxu0 %v121
    %v215 = vpop.f32.mrf.mxu0
    %v216 = vadd.f32 %v91, %v215
    %217 = vdwg.mxu0
    %218 = vmatpush.msra.mxu0 0.0
    %219 = vmatpush.msra.mxu0 0.0
    %220 = vmatpush.msra.mxu0 0.0
    %221 = vmatpush.msra.mxu0 0.0
    %222 = vmatpush.msra.mxu0 0.0
    %223 = vmatpush.msra.mxu0 0.0
    %224 = vmatpush.msra.mxu0 0.0
    %225 = vmatpush.msra.mxu0 0.0
    %226 = vmatpush.msra.mxu0 0.0
    %227 = vmatpush.msra.mxu0 0.0
    %228 = vmatpush.msra.mxu0 0.0
    %229 = vmatpush.msra.mxu0 %v131
    %230 = vmatpush.msra.mxu0 %v82
    %231 = vmatpush.msra.mxu0 %v78
    %232 = vmatpush.msra.mxu0 %v74
    %233 = vmatpush.msra.mxu0 %v70
    %234 = vmatmul.f32.gmra.mxu0 %v100
    %v235 = vpop.f32.mrf.mxu0
    %v236 = vadd.f32 %v92, %v235
    %237 = vmatmul.f32.gmra.mxu0 %v103
    %v238 = vpop.f32.mrf.mxu0
    %v239 = vadd.f32 %v92, %v238
    %240 = vmatmul.f32.gmra.mxu0 %v106
    %v241 = vpop.f32.mrf.mxu0
    %v242 = vadd.f32 %v92, %v241
    %243 = vmatmul.f32.gmra.mxu0 %v109
    %v244 = vpop.f32.mrf.mxu0
    %v245 = vadd.f32 %v92, %v244
    %246 = vmatmul.f32.gmra.mxu0 %v112
    %v247 = vpop.f32.mrf.mxu0
    %v248 = vadd.f32 %v92, %v247
    %249 = vmatmul.f32.gmra.mxu0 %v115
    %v250 = vpop.f32.mrf.mxu0
    %v251 = vadd.f32 %v92, %v250
    %252 = vmatmul.f32.gmra.mxu0 %v118
    %v253 = vpop.f32.mrf.mxu0
    %v254 = vadd.f32 %v92, %v253
    %255 = vmatmul.f32.gmra.mxu0 %v121
    %v256 = vpop.f32.mrf.mxu0
    %v257 = vadd.f32 %v92, %v256
    %258 = vdwg.mxu0
    %259 = vmatpush.msra.mxu0 0.0
    %260 = vmatpush.msra.mxu0 0.0
    %261 = vmatpush.msra.mxu0 0.0
    %262 = vmatpush.msra.mxu0 0.0
    %263 = vmatpush.msra.mxu0 0.0
    %264 = vmatpush.msra.mxu0 0.0
    %265 = vmatpush.msra.mxu0 0.0
    %266 = vmatpush.msra.mxu0 0.0
    %267 = vmatpush.msra.mxu0 0.0
    %268 = vmatpush.msra.mxu0 0.0
    %269 = vmatpush.msra.mxu0 0.0
    %270 = vmatpush.msra.mxu0 %v134
    %271 = vmatpush.msra.mxu0 %v83
    %272 = vmatpush.msra.mxu0 %v79
    %273 = vmatpush.msra.mxu0 %v75
    %274 = vmatpush.msra.mxu0 %v71
    %275 = vmatmul.f32.gmra.mxu0 %v100
    %v276 = vpop.f32.mrf.mxu0
    %v277 = vadd.f32 %v93, %v276
    %278 = vmatmul.f32.gmra.mxu0 %v103
    %v279 = vpop.f32.mrf.mxu0
    %v280 = vadd.f32 %v93, %v279
    %281 = vmatmul.f32.gmra.mxu0 %v106
    %v282 = vpop.f32.mrf.mxu0
    %v283 = vadd.f32 %v93, %v282
    %284 = vmatmul.f32.gmra.mxu0 %v109
    %v285 = vpop.f32.mrf.mxu0
    %v286 = vadd.f32 %v93, %v285
    %287 = vmatmul.f32.gmra.mxu0 %v112
    %v288 = vpop.f32.mrf.mxu0
    %v289 = vadd.f32 %v93, %v288
    %290 = vmatmul.f32.gmra.mxu0 %v115
    %v291 = vpop.f32.mrf.mxu0
    %v292 = vadd.f32 %v93, %v291
    %293 = vmatmul.f32.gmra.mxu0 %v118
    %v294 = vpop.f32.mrf.mxu0
    %v295 = vadd.f32 %v93, %v294
    %296 = vmatmul.f32.gmra.mxu0 %v121
    %v297 = vpop.f32.mrf.mxu0
    %v298 = vadd.f32 %v93, %v297
    %299 = vdwg.mxu0
    %v300 = vld [vmem:[#allocation5] sm:$0xff]
    %v301 = vld [vmem:[#allocation5 + $0x8] sm:$0xff]
    %v302 = vld [vmem:[#allocation5 + $0x10] sm:$0xff]
    %v303 = vld [vmem:[#allocation5 + $0x18] sm:$0xff]
    %v304 = vld [vmem:[#allocation5 + $0x20] sm:$0xff]
    %v305 = vld [vmem:[#allocation5 + $0x28] sm:$0xff]
    %v306 = vld [vmem:[#allocation5 + $0x30] sm:$0xff]
    %v307 = vld [vmem:[#allocation5 + $0x38] sm:$0xff]
    %v308 = vld [vmem:[#allocation5 + $0x40] sm:$0xff]
    %v309 = vld [vmem:[#allocation5 + $0x48] sm:$0xff]
    %v310 = vld [vmem:[#allocation5 + $0x50] sm:$0xff]
    %v311 = vld [vmem:[#allocation5 + $0x58] sm:$0xff]
    %v312 = vld [vmem:[#allocation5 + $0x60] sm:$0xff]
    %v313 = vld [vmem:[#allocation5 + $0x68] sm:$0xff]
    %v314 = vld [vmem:[#allocation5 + $0x70] sm:$0xff]
    %v315 = vld [vmem:[#allocation5 + $0x78] sm:$0xff]
    %v316 = vld [vmem:[#allocation5 + $0x80] sm:$0xff]
    %v317 = vld [vmem:[#allocation5 + $0x88] sm:$0xff]
    %v318 = vld [vmem:[#allocation5 + $0x90] sm:$0xff]
    %v319 = vld [vmem:[#allocation5 + $0x98] sm:$0xff]
    %v320 = vld [vmem:[#allocation5 + $0xa0] sm:$0xff]
    %v321 = vld [vmem:[#allocation5 + $0xa8] sm:$0xff]
    %v322 = vld [vmem:[#allocation5 + $0xb0] sm:$0xff]
    %v323 = vld [vmem:[#allocation5 + $0xb8] sm:$0xff]
    %v324 = vld [vmem:[#allocation5 + $0xc0] sm:$0xff]
    %v325 = vld [vmem:[#allocation5 + $0xc8] sm:$0xff]
    %v326 = vld [vmem:[#allocation5 + $0xd0] sm:$0xff]
    %v327 = vld [vmem:[#allocation5 + $0xd8] sm:$0xff]
    %v328 = vld [vmem:[#allocation5 + $0xe0] sm:$0xff]
    %v329 = vld [vmem:[#allocation5 + $0xe8] sm:$0xff]
    %v330 = vld [vmem:[#allocation5 + $0xf0] sm:$0xff]
    %v331 = vld [vmem:[#allocation5 + $0xf8] sm:$0xff]
    %v332 = vld [vmem:[#allocation5 + $0x100] sm:$0xff]
    %v333 = vld [vmem:[#allocation5 + $0x108] sm:$0xff]
    %v334 = vld [vmem:[#allocation5 + $0x110] sm:$0xff]
    %v335 = vld [vmem:[#allocation5 + $0x118] sm:$0xff]
    %v336 = vld [vmem:[#allocation5 + $0x120] sm:$0xff]
    %v337 = vld [vmem:[#allocation5 + $0x128] sm:$0xff]
    %v338 = vld [vmem:[#allocation5 + $0x130] sm:$0xff]
    %v339 = vld [vmem:[#allocation5 + $0x138] sm:$0xff]
    %v340 = vld [vmem:[#allocation5 + $0x140] sm:$0xff]
    %v341 = vld [vmem:[#allocation5 + $0x148] sm:$0xff]
    %v342 = vld [vmem:[#allocation5 + $0x150] sm:$0xff]
    %v343 = vld [vmem:[#allocation5 + $0x158] sm:$0xff]
    %v344 = vld [vmem:[#allocation5 + $0x160] sm:$0xff]
    %v345 = vld [vmem:[#allocation5 + $0x168] sm:$0xff]
    %v346 = vld [vmem:[#allocation5 + $0x170] sm:$0xff]
    %v347 = vld [vmem:[#allocation5 + $0x178] sm:$0xff]
    %v348 = vld [vmem:[#allocation5 + $0x180] sm:$0xff]
    %v349 = vld [vmem:[#allocation5 + $0x188] sm:$0xff]
    %v350 = vld [vmem:[#allocation5 + $0x190] sm:$0xff]
    %v351 = vld [vmem:[#allocation5 + $0x198] sm:$0xff]
    %v352 = vld [vmem:[#allocation5 + $0x1a0] sm:$0xff]
    %v353 = vld [vmem:[#allocation5 + $0x1a8] sm:$0xff]
    %v354 = vld [vmem:[#allocation5 + $0x1b0] sm:$0xff]
    %v355 = vld [vmem:[#allocation5 + $0x1b8] sm:$0xff]
    %v356 = vld [vmem:[#allocation5 + $0x1c0] sm:$0xff]
    %v357 = vld [vmem:[#allocation5 + $0x1c8] sm:$0xff]
    %v358 = vld [vmem:[#allocation5 + $0x1d0] sm:$0xff]
    %v359 = vld [vmem:[#allocation5 + $0x1d8] sm:$0xff]
    %v360 = vld [vmem:[#allocation5 + $0x1e0] sm:$0xff]
    %v361 = vld [vmem:[#allocation5 + $0x1e8] sm:$0xff]
    %v362 = vld [vmem:[#allocation5 + $0x1f0] sm:$0xff]
    %v363 = vld [vmem:[#allocation5 + $0x1f8] sm:$0xff]
    %v364 = vld [vmem:[%s1] sm:$0xff]
    %365 = vmatpush.msra.mxu0 %v360
    %366 = vmatpush.msra.mxu0 %v356
    %367 = vmatpush.msra.mxu0 %v352
    %368 = vmatpush.msra.mxu0 %v348
    %369 = vmatpush.msra.mxu0 %v344
    %370 = vmatpush.msra.mxu0 %v340
    %371 = vmatpush.msra.mxu0 %v336
    %372 = vmatpush.msra.mxu0 %v332
    %373 = vmatpush.msra.mxu0 %v328
    %374 = vmatpush.msra.mxu0 %v324
    %375 = vmatpush.msra.mxu0 %v320
    %376 = vmatpush.msra.mxu0 %v316
    %377 = vmatpush.msra.mxu0 %v312
    %378 = vmatpush.msra.mxu0 %v308
    %379 = vmatpush.msra.mxu0 %v304
    %380 = vmatpush.msra.mxu0 %v300
    %381 = vmatmul.f32.gmra.mxu0 0.0
    %v382 = vpop.f32.mrf.mxu0
    %v383 = vadd.f32 0.0, %v382
    %384 = vdwg.mxu0
    %385 = vmatpush.msra.mxu0 %v361
    %386 = vmatpush.msra.mxu0 %v357
    %387 = vmatpush.msra.mxu0 %v353
    %388 = vmatpush.msra.mxu0 %v349
    %389 = vmatpush.msra.mxu0 %v345
    %390 = vmatpush.msra.mxu0 %v341
    %391 = vmatpush.msra.mxu0 %v337
    %392 = vmatpush.msra.mxu0 %v333
    %393 = vmatpush.msra.mxu0 %v329
    %394 = vmatpush.msra.mxu0 %v325
    %395 = vmatpush.msra.mxu0 %v321
    %396 = vmatpush.msra.mxu0 %v317
    %397 = vmatpush.msra.mxu0 %v313
    %398 = vmatpush.msra.mxu0 %v309
    %399 = vmatpush.msra.mxu0 %v305
    %400 = vmatpush.msra.mxu0 %v301
    %401 = vmatmul.f32.gmra.mxu0 0.0
    %v402 = vpop.f32.mrf.mxu0
    %v403 = vadd.f32 0.0, %v402
    %404 = vdwg.mxu0
    %405 = vmatpush.msra.mxu0 %v362
    %406 = vmatpush.msra.mxu0 %v358
    %407 = vmatpush.msra.mxu0 %v354
    %408 = vmatpush.msra.mxu0 %v350
    %409 = vmatpush.msra.mxu0 %v346
    %410 = vmatpush.msra.mxu0 %v342
    %411 = vmatpush.msra.mxu0 %v338
    %412 = vmatpush.msra.mxu0 %v334
    %413 = vmatpush.msra.mxu0 %v330
    %414 = vmatpush.msra.mxu0 %v326
    %415 = vmatpush.msra.mxu0 %v322
    %416 = vmatpush.msra.mxu0 %v318
    %417 = vmatpush.msra.mxu0 %v314
    %418 = vmatpush.msra.mxu0 %v310
    %419 = vmatpush.msra.mxu0 %v306
    %420 = vmatpush.msra.mxu0 %v302
    %421 = vmatmul.f32.gmra.mxu0 0.0
    %v422 = vpop.f32.mrf.mxu0
    %v423 = vadd.f32 0.0, %v422
    %424 = vdwg.mxu0
    %425 = vmatpush.msra.mxu0 %v363
    %426 = vmatpush.msra.mxu0 %v359
    %427 = vmatpush.msra.mxu0 %v355
    %428 = vmatpush.msra.mxu0 %v351
    %429 = vmatpush.msra.mxu0 %v347
    %430 = vmatpush.msra.mxu0 %v343
    %431 = vmatpush.msra.mxu0 %v339
    %432 = vmatpush.msra.mxu0 %v335
    %433 = vmatpush.msra.mxu0 %v331
    %434 = vmatpush.msra.mxu0 %v327
    %435 = vmatpush.msra.mxu0 %v323
    %436 = vmatpush.msra.mxu0 %v319
    %437 = vmatpush.msra.mxu0 %v315
    %438 = vmatpush.msra.mxu0 %v311
    %439 = vmatpush.msra.mxu0 %v307
    %440 = vmatpush.msra.mxu0 %v303
    %441 = vmatmul.f32.gmra.mxu0 0.0
    %v442 = vpop.f32.mrf.mxu0
    %v443 = vadd.f32 0.0, %v442
    %444 = vdwg.mxu0
    %v445 = vadd.f32 %v154, %v383
    %v446 = vadd.f32 %v195, %v403
    %v447 = vadd.f32 %v236, %v423
    %v448 = vadd.f32 %v277, %v443
    %v449 = vxor.u32 %v445, 2147483648
    %v450 = vmul.f32 %v449, 1.442695
    %v451 = vpow.pop %v450
    %v452 = vadd.f32 %v451, 1.0
    %v453 = vrcp.pop %v452
    %v454 = vmul.f32 %v452, %v453
    %v455 = vsub.f32 1.0, %v454
    %v456 = vmul.f32 %v453, %v455
    %v457 = vadd.f32 %v453, %v456
    %vm458 = vweird.f32 %v452
    %vm459 = vweird.f32 %v453
    %vm460 = vmor %vm458, %vm459
    %v461 = vsel %vm460, %v453, %v457
    %v462 = vand.u32 2147483647, %v452
    %vm463 = vcmp.eq.f32.partialorder %v462, 8.507059e+37
    %v464 = vand.u32 %v452, 2147483648
    %v465 = vor.u32 1.1754944e-38, %v464
    %v466 = vsel %vm463, %v465, %v461
    %v467 = vmul.f32 1.0, %v466
    %v468 = vxor.u32 %v446, 2147483648
    %v469 = vmul.f32 %v468, 1.442695
    %v470 = vpow.pop %v469
    %v471 = vadd.f32 %v470, 1.0
    %v472 = vrcp.pop %v471
    %v473 = vmul.f32 %v471, %v472
    %v474 = vsub.f32 1.0, %v473
    %v475 = vmul.f32 %v472, %v474
    %v476 = vadd.f32 %v472, %v475
    %vm477 = vweird.f32 %v471
    %vm478 = vweird.f32 %v472
    %vm479 = vmor %vm477, %vm478
    %v480 = vsel %vm479, %v472, %v476
    %v481 = vand.u32 2147483647, %v471
    %vm482 = vcmp.eq.f32.partialorder %v481, 8.507059e+37
    %v483 = vand.u32 %v471, 2147483648
    %v484 = vor.u32 1.1754944e-38, %v483
    %v485 = vsel %vm482, %v484, %v480
    %v486 = vmul.f32 1.0, %v485
    %v487 = vtanh.pop %v447
    %v488 = vxor.u32 %v448, 2147483648
    %v489 = vmul.f32 %v488, 1.442695
    %v490 = vpow.pop %v489
    %v491 = vadd.f32 %v490, 1.0
    %v492 = vrcp.pop %v491
    %v493 = vmul.f32 %v491, %v492
    %v494 = vsub.f32 1.0, %v493
    %v495 = vmul.f32 %v492, %v494
    %v496 = vadd.f32 %v492, %v495
    %vm497 = vweird.f32 %v491
    %vm498 = vweird.f32 %v492
    %vm499 = vmor %vm497, %vm498
    %v500 = vsel %vm499, %v492, %v496
    %v501 = vand.u32 2147483647, %v491
    %vm502 = vcmp.eq.f32.partialorder %v501, 8.507059e+37
    %v503 = vand.u32 %v491, 2147483648
    %v504 = vor.u32 1.1754944e-38, %v503
    %v505 = vsel %vm502, %v504, %v500
    %v506 = vmul.f32 1.0, %v505
    %v507 = vmul.f32 %v486, 0.0
    %v508 = vmul.f32 %v467, %v487
    %v509 = vadd.f32 %v507, %v508
    %v510 = vtanh.pop %v509
    %v511 = vmul.f32 %v506, %v510
    %vm512 = vcmp.gt.s32.totalorder %v364, 0
    %v513 = vsel %vm512, 1, 0
    %514 = vset.pattern.permute.xlu0 0
    %515 = vperm.xlu0 %514, %v513
    %v516 = vpop.permute.xlu0 %515
    %vm517 = vcmp.eq.s32.totalorder %v516, 1
    %v518 = vsel %vm517, %v511, 0.0
    %v519 = vsel %vm517, %v509, 0.0
    %520 = vmatpush.msra.mxu0 %v360
    %521 = vmatpush.msra.mxu0 %v356
    %522 = vmatpush.msra.mxu0 %v352
    %523 = vmatpush.msra.mxu0 %v348
    %524 = vmatpush.msra.mxu0 %v344
    %525 = vmatpush.msra.mxu0 %v340
    %526 = vmatpush.msra.mxu0 %v336
    %527 = vmatpush.msra.mxu0 %v332
    %528 = vmatpush.msra.mxu0 %v328
    %529 = vmatpush.msra.mxu0 %v324
    %530 = vmatpush.msra.mxu0 %v320
    %531 = vmatpush.msra.mxu0 %v316
    %532 = vmatpush.msra.mxu0 %v312
    %533 = vmatpush.msra.mxu0 %v308
    %534 = vmatpush.msra.mxu0 %v304
    %535 = vmatpush.msra.mxu0 %v300
    %536 = vmatmul.f32.gmra.mxu0 %v518
    %v537 = vpop.f32.mrf.mxu0
    %v538 = vadd.f32 0.0, %v537
    %539 = vdwg.mxu0
    %540 = vmatpush.msra.mxu0 %v361
    %541 = vmatpush.msra.mxu0 %v357
    %542 = vmatpush.msra.mxu0 %v353
    %543 = vmatpush.msra.mxu0 %v349
    %544 = vmatpush.msra.mxu0 %v345
    %545 = vmatpush.msra.mxu0 %v341
    %546 = vmatpush.msra.mxu0 %v337
    %547 = vmatpush.msra.mxu0 %v333
    %548 = vmatpush.msra.mxu0 %v329
    %549 = vmatpush.msra.mxu0 %v325
    %550 = vmatpush.msra.mxu0 %v321
    %551 = vmatpush.msra.mxu0 %v317
    %552 = vmatpush.msra.mxu0 %v313
    %553 = vmatpush.msra.mxu0 %v309
    %554 = vmatpush.msra.mxu0 %v305
    %555 = vmatpush.msra.mxu0 %v301
    %556 = vmatmul.f32.gmra.mxu0 %v518
    %v557 = vpop.f32.mrf.mxu0
    %v558 = vadd.f32 0.0, %v557
    %559 = vdwg.mxu0
    %560 = vmatpush.msra.mxu0 %v362
    %561 = vmatpush.msra.mxu0 %v358
    %562 = vmatpush.msra.mxu0 %v354
    %563 = vmatpush.msra.mxu0 %v350
    %564 = vmatpush.msra.mxu0 %v346
    %565 = vmatpush.msra.mxu0 %v342
    %566 = vmatpush.msra.mxu0 %v338
    %567 = vmatpush.msra.mxu0 %v334
    %568 = vmatpush.msra.mxu0 %v330
    %569 = vmatpush.msra.mxu0 %v326
    %570 = vmatpush.msra.mxu0 %v322
    %571 = vmatpush.msra.mxu0 %v318
    %572 = vmatpush.msra.mxu0 %v314
    %573 = vmatpush.msra.mxu0 %v310
    %574 = vmatpush.msra.mxu0 %v306
    %575 = vmatpush.msra.mxu0 %v302
    %576 = vmatmul.f32.gmra.mxu0 %v518
    %v577 = vpop.f32.mrf.mxu0
    %v578 = vadd.f32 0.0, %v577
    %579 = vdwg.mxu0
    %580 = vmatpush.msra.mxu0 %v363
    %581 = vmatpush.msra.mxu0 %v359
    %582 = vmatpush.msra.mxu0 %v355
    %583 = vmatpush.msra.mxu0 %v351
    %584 = vmatpush.msra.mxu0 %v347
    %585 = vmatpush.msra.mxu0 %v343
    %586 = vmatpush.msra.mxu0 %v339
    %587 = vmatpush.msra.mxu0 %v335
    %588 = vmatpush.msra.mxu0 %v331
    %589 = vmatpush.msra.mxu0 %v327
    %590 = vmatpush.msra.mxu0 %v323
    %591 = vmatpush.msra.mxu0 %v319
    %592 = vmatpush.msra.mxu0 %v315
    %593 = vmatpush.msra.mxu0 %v311
    %594 = vmatpush.msra.mxu0 %v307
    %595 = vmatpush.msra.mxu0 %v303
    %596 = vmatmul.f32.gmra.mxu0 %v518
    %v597 = vpop.f32.mrf.mxu0
    %v598 = vadd.f32 0.0, %v597
    %599 = vdwg.mxu0
    %v600 = vadd.f32 %v157, %v538
    %v601 = vadd.f32 %v198, %v558
    %v602 = vadd.f32 %v239, %v578
    %v603 = vadd.f32 %v280, %v598
    %v604 = vxor.u32 %v600, 2147483648
    %v605 = vmul.f32 %v604, 1.442695
    %v606 = vpow.pop %v605
    %v607 = vadd.f32 %v606, 1.0
    %v608 = vrcp.pop %v607
    %v609 = vmul.f32 %v607, %v608
    %v610 = vsub.f32 1.0, %v609
    %v611 = vmul.f32 %v608, %v610
    %v612 = vadd.f32 %v608, %v611
    %vm613 = vweird.f32 %v607
    %vm614 = vweird.f32 %v608
    %vm615 = vmor %vm613, %vm614
    %v616 = vsel %vm615, %v608, %v612
    %v617 = vand.u32 2147483647, %v607
    %vm618 = vcmp.eq.f32.partialorder %v617, 8.507059e+37
    %v619 = vand.u32 %v607, 2147483648
    %v620 = vor.u32 1.1754944e-38, %v619
    %v621 = vsel %vm618, %v620, %v616
    %v622 = vmul.f32 1.0, %v621
    %v623 = vxor.u32 %v601, 2147483648
    %v624 = vmul.f32 %v623, 1.442695
    %v625 = vpow.pop %v624
    %v626 = vadd.f32 %v625, 1.0
    %v627 = vrcp.pop %v626
    %v628 = vmul.f32 %v626, %v627
    %v629 = vsub.f32 1.0, %v628
    %v630 = vmul.f32 %v627, %v629
    %v631 = vadd.f32 %v627, %v630
    %vm632 = vweird.f32 %v626
    %vm633 = vweird.f32 %v627
    %vm634 = vmor %vm632, %vm633
    %v635 = vsel %vm634, %v627, %v631
    %v636 = vand.u32 2147483647, %v626
    %vm637 = vcmp.eq.f32.partialorder %v636, 8.507059e+37
    %v638 = vand.u32 %v626, 2147483648
    %v639 = vor.u32 1.1754944e-38, %v638
    %v640 = vsel %vm637, %v639, %v635
    %v641 = vmul.f32 1.0, %v640
    %v642 = vtanh.pop %v602
    %v643 = vxor.u32 %v603, 2147483648
    %v644 = vmul.f32 %v643, 1.442695
    %v645 = vpow.pop %v644
    %v646 = vadd.f32 %v645, 1.0
    %v647 = vrcp.pop %v646
    %v648 = vmul.f32 %v646, %v647
    %v649 = vsub.f32 1.0, %v648
    %v650 = vmul.f32 %v647, %v649
    %v651 = vadd.f32 %v647, %v650
    %vm652 = vweird.f32 %v646
    %vm653 = vweird.f32 %v647
    %vm654 = vmor %vm652, %vm653
    %v655 = vsel %vm654, %v647, %v651
    %v656 = vand.u32 2147483647, %v646
    %vm657 = vcmp.eq.f32.partialorder %v656, 8.507059e+37
    %v658 = vand.u32 %v646, 2147483648
    %v659 = vor.u32 1.1754944e-38, %v658
    %v660 = vsel %vm657, %v659, %v655
    %v661 = vmul.f32 1.0, %v660
    %v662 = vmul.f32 %v641, %v519
    %v663 = vmul.f32 %v622, %v642
    %v664 = vadd.f32 %v662, %v663
    %v665 = vtanh.pop %v664
    %v666 = vmul.f32 %v661, %v665
    %vm667 = vcmp.gt.s32.totalorder %v364, 1
    %v668 = vsel %vm667, 1, 0
    %669 = vset.pattern.permute.xlu0 0
    %670 = vperm.xlu0 %669, %v668
    %v671 = vpop.permute.xlu0 %670
    %vm672 = vcmp.eq.s32.totalorder %v671, 1
    %v673 = vsel %vm672, %v666, %v518
    %v674 = vsel %vm672, %v664, %v519
    %675 = vmatpush.msra.mxu0 %v360
    %676 = vmatpush.msra.mxu0 %v356
    %677 = vmatpush.msra.mxu0 %v352
    %678 = vmatpush.msra.mxu0 %v348
    %679 = vmatpush.msra.mxu0 %v344
    %680 = vmatpush.msra.mxu0 %v340
    %681 = vmatpush.msra.mxu0 %v336
    %682 = vmatpush.msra.mxu0 %v332
    %683 = vmatpush.msra.mxu0 %v328
    %684 = vmatpush.msra.mxu0 %v324
    %685 = vmatpush.msra.mxu0 %v320
    %686 = vmatpush.msra.mxu0 %v316
    %687 = vmatpush.msra.mxu0 %v312
    %688 = vmatpush.msra.mxu0 %v308
    %689 = vmatpush.msra.mxu0 %v304
    %690 = vmatpush.msra.mxu0 %v300
    %691 = vmatmul.f32.gmra.mxu0 %v673
    %v692 = vpop.f32.mrf.mxu0
    %v693 = vadd.f32 0.0, %v692
    %694 = vdwg.mxu0
    %695 = vmatpush.msra.mxu0 %v361
    %696 = vmatpush.msra.mxu0 %v357
    %697 = vmatpush.msra.mxu0 %v353
    %698 = vmatpush.msra.mxu0 %v349
    %699 = vmatpush.msra.mxu0 %v345
    %700 = vmatpush.msra.mxu0 %v341
    %701 = vmatpush.msra.mxu0 %v337
    %702 = vmatpush.msra.mxu0 %v333
    %703 = vmatpush.msra.mxu0 %v329
    %704 = vmatpush.msra.mxu0 %v325
    %705 = vmatpush.msra.mxu0 %v321
    %706 = vmatpush.msra.mxu0 %v317
    %707 = vmatpush.msra.mxu0 %v313
    %708 = vmatpush.msra.mxu0 %v309
    %709 = vmatpush.msra.mxu0 %v305
    %710 = vmatpush.msra.mxu0 %v301
    %711 = vmatmul.f32.gmra.mxu0 %v673
    %v712 = vpop.f32.mrf.mxu0
    %v713 = vadd.f32 0.0, %v712
    %714 = vdwg.mxu0
    %715 = vmatpush.msra.mxu0 %v362
    %716 = vmatpush.msra.mxu0 %v358
    %717 = vmatpush.msra.mxu0 %v354
    %718 = vmatpush.msra.mxu0 %v350
    %719 = vmatpush.msra.mxu0 %v346
    %720 = vmatpush.msra.mxu0 %v342
    %721 = vmatpush.msra.mxu0 %v338
    %722 = vmatpush.msra.mxu0 %v334
    %723 = vmatpush.msra.mxu0 %v330
    %724 = vmatpush.msra.mxu0 %v326
    %725 = vmatpush.msra.mxu0 %v322
    %726 = vmatpush.msra.mxu0 %v318
    %727 = vmatpush.msra.mxu0 %v314
    %728 = vmatpush.msra.mxu0 %v310
    %729 = vmatpush.msra.mxu0 %v306
    %730 = vmatpush.msra.mxu0 %v302
    %731 = vmatmul.f32.gmra.mxu0 %v673
    %v732 = vpop.f32.mrf.mxu0
    %v733 = vadd.f32 0.0, %v732
    %734 = vdwg.mxu0
    %735 = vmatpush.msra.mxu0 %v363
    %736 = vmatpush.msra.mxu0 %v359
    %737 = vmatpush.msra.mxu0 %v355
    %738 = vmatpush.msra.mxu0 %v351
    %739 = vmatpush.msra.mxu0 %v347
    %740 = vmatpush.msra.mxu0 %v343
    %741 = vmatpush.msra.mxu0 %v339
    %742 = vmatpush.msra.mxu0 %v335
    %743 = vmatpush.msra.mxu0 %v331
    %744 = vmatpush.msra.mxu0 %v327
    %745 = vmatpush.msra.mxu0 %v323
    %746 = vmatpush.msra.mxu0 %v319
    %747 = vmatpush.msra.mxu0 %v315
    %748 = vmatpush.msra.mxu0 %v311
    %749 = vmatpush.msra.mxu0 %v307
    %750 = vmatpush.msra.mxu0 %v303
    %751 = vmatmul.f32.gmra.mxu0 %v673
    %v752 = vpop.f32.mrf.mxu0
    %v753 = vadd.f32 0.0, %v752
    %754 = vdwg.mxu0
    %v755 = vadd.f32 %v160, %v693
    %v756 = vadd.f32 %v201, %v713
    %v757 = vadd.f32 %v242, %v733
    %v758 = vadd.f32 %v283, %v753
    %v759 = vxor.u32 %v755, 2147483648
    %v760 = vmul.f32 %v759, 1.442695
    %v761 = vpow.pop %v760
    %v762 = vadd.f32 %v761, 1.0
    %v763 = vrcp.pop %v762
    %v764 = vmul.f32 %v762, %v763
    %v765 = vsub.f32 1.0, %v764
    %v766 = vmul.f32 %v763, %v765
    %v767 = vadd.f32 %v763, %v766
    %vm768 = vweird.f32 %v762
    %vm769 = vweird.f32 %v763
    %vm770 = vmor %vm768, %vm769
    %v771 = vsel %vm770, %v763, %v767
    %v772 = vand.u32 2147483647, %v762
    %vm773 = vcmp.eq.f32.partialorder %v772, 8.507059e+37
    %v774 = vand.u32 %v762, 2147483648
    %v775 = vor.u32 1.1754944e-38, %v774
    %v776 = vsel %vm773, %v775, %v771
    %v777 = vmul.f32 1.0, %v776
    %v778 = vxor.u32 %v756, 2147483648
    %v779 = vmul.f32 %v778, 1.442695
    %v780 = vpow.pop %v779
    %v781 = vadd.f32 %v780, 1.0
    %v782 = vrcp.pop %v781
    %v783 = vmul.f32 %v781, %v782
    %v784 = vsub.f32 1.0, %v783
    %v785 = vmul.f32 %v782, %v784
    %v786 = vadd.f32 %v782, %v785
    %vm787 = vweird.f32 %v781
    %vm788 = vweird.f32 %v782
    %vm789 = vmor %vm787, %vm788
    %v790 = vsel %vm789, %v782, %v786
    %v791 = vand.u32 2147483647, %v781
    %vm792 = vcmp.eq.f32.partialorder %v791, 8.507059e+37
    %v793 = vand.u32 %v781, 2147483648
    %v794 = vor.u32 1.1754944e-38, %v793
    %v795 = vsel %vm792, %v794, %v790
    %v796 = vmul.f32 1.0, %v795
    %v797 = vtanh.pop %v757
    %v798 = vxor.u32 %v758, 2147483648
    %v799 = vmul.f32 %v798, 1.442695
    %v800 = vpow.pop %v799
    %v801 = vadd.f32 %v800, 1.0
    %v802 = vrcp.pop %v801
    %v803 = vmul.f32 %v801, %v802
    %v804 = vsub.f32 1.0, %v803
    %v805 = vmul.f32 %v802, %v804
    %v806 = vadd.f32 %v802, %v805
    %vm807 = vweird.f32 %v801
    %vm808 = vweird.f32 %v802
    %vm809 = vmor %vm807, %vm808
    %v810 = vsel %vm809, %v802, %v806
    %v811 = vand.u32 2147483647, %v801
    %vm812 = vcmp.eq.f32.partialorder %v811, 8.507059e+37
    %v813 = vand.u32 %v801, 2147483648
    %v814 = vor.u32 1.1754944e-38, %v813
    %v815 = vsel %vm812, %v814, %v810
    %v816 = vmul.f32 1.0, %v815
    %v817 = vmul.f32 %v796, %v674
    %v818 = vmul.f32 %v777, %v797
    %v819 = vadd.f32 %v817, %v818
    %v820 = vtanh.pop %v819
    %v821 = vmul.f32 %v816, %v820
    %vm822 = vcmp.gt.s32.totalorder %v364, 2
    %v823 = vsel %vm822, 1, 0
    %824 = vset.pattern.permute.xlu0 0
    %825 = vperm.xlu0 %824, %v823
    %v826 = vpop.permute.xlu0 %825
    %vm827 = vcmp.eq.s32.totalorder %v826, 1
    %v828 = vsel %vm827, %v821, %v673
    %v829 = vsel %vm827, %v819, %v674
    %830 = vmatpush.msra.mxu0 %v360
    %831 = vmatpush.msra.mxu0 %v356
    %832 = vmatpush.msra.mxu0 %v352
    %833 = vmatpush.msra.mxu0 %v348
    %834 = vmatpush.msra.mxu0 %v344
    %835 = vmatpush.msra.mxu0 %v340
    %836 = vmatpush.msra.mxu0 %v336
    %837 = vmatpush.msra.mxu0 %v332
    %838 = vmatpush.msra.mxu0 %v328
    %839 = vmatpush.msra.mxu0 %v324
    %840 = vmatpush.msra.mxu0 %v320
    %841 = vmatpush.msra.mxu0 %v316
    %842 = vmatpush.msra.mxu0 %v312
    %843 = vmatpush.msra.mxu0 %v308
    %844 = vmatpush.msra.mxu0 %v304
    %845 = vmatpush.msra.mxu0 %v300
    %846 = vmatmul.f32.gmra.mxu0 %v828
    %v847 = vpop.f32.mrf.mxu0
    %v848 = vadd.f32 0.0, %v847
    %849 = vdwg.mxu0
    %850 = vmatpush.msra.mxu0 %v361
    %851 = vmatpush.msra.mxu0 %v357
    %852 = vmatpush.msra.mxu0 %v353
    %853 = vmatpush.msra.mxu0 %v349
    %854 = vmatpush.msra.mxu0 %v345
    %855 = vmatpush.msra.mxu0 %v341
    %856 = vmatpush.msra.mxu0 %v337
    %857 = vmatpush.msra.mxu0 %v333
    %858 = vmatpush.msra.mxu0 %v329
    %859 = vmatpush.msra.mxu0 %v325
    %860 = vmatpush.msra.mxu0 %v321
    %861 = vmatpush.msra.mxu0 %v317
    %862 = vmatpush.msra.mxu0 %v313
    %863 = vmatpush.msra.mxu0 %v309
    %864 = vmatpush.msra.mxu0 %v305
    %865 = vmatpush.msra.mxu0 %v301
    %866 = vmatmul.f32.gmra.mxu0 %v828
    %v867 = vpop.f32.mrf.mxu0
    %v868 = vadd.f32 0.0, %v867
    %869 = vdwg.mxu0
    %870 = vmatpush.msra.mxu0 %v362
    %871 = vmatpush.msra.mxu0 %v358
    %872 = vmatpush.msra.mxu0 %v354
    %873 = vmatpush.msra.mxu0 %v350
    %874 = vmatpush.msra.mxu0 %v346
    %875 = vmatpush.msra.mxu0 %v342
    %876 = vmatpush.msra.mxu0 %v338
    %877 = vmatpush.msra.mxu0 %v334
    %878 = vmatpush.msra.mxu0 %v330
    %879 = vmatpush.msra.mxu0 %v326
    %880 = vmatpush.msra.mxu0 %v322
    %881 = vmatpush.msra.mxu0 %v318
    %882 = vmatpush.msra.mxu0 %v314
    %883 = vmatpush.msra.mxu0 %v310
    %884 = vmatpush.msra.mxu0 %v306
    %885 = vmatpush.msra.mxu0 %v302
    %886 = vmatmul.f32.gmra.mxu0 %v828
    %v887 = vpop.f32.mrf.mxu0
    %v888 = vadd.f32 0.0, %v887
    %889 = vdwg.mxu0
    %890 = vmatpush.msra.mxu0 %v363
    %891 = vmatpush.msra.mxu0 %v359
    %892 = vmatpush.msra.mxu0 %v355
    %893 = vmatpush.msra.mxu0 %v351
    %894 = vmatpush.msra.mxu0 %v347
    %895 = vmatpush.msra.mxu0 %v343
    %896 = vmatpush.msra.mxu0 %v339
    %897 = vmatpush.msra.mxu0 %v335
    %898 = vmatpush.msra.mxu0 %v331
    %899 = vmatpush.msra.mxu0 %v327
    %900 = vmatpush.msra.mxu0 %v323
    %901 = vmatpush.msra.mxu0 %v319
    %902 = vmatpush.msra.mxu0 %v315
    %903 = vmatpush.msra.mxu0 %v311
    %904 = vmatpush.msra.mxu0 %v307
    %905 = vmatpush.msra.mxu0 %v303
    %906 = vmatmul.f32.gmra.mxu0 %v828
    %v907 = vpop.f32.mrf.mxu0
    %v908 = vadd.f32 0.0, %v907
    %909 = vdwg.mxu0
    %v910 = vadd.f32 %v163, %v848
    %v911 = vadd.f32 %v204, %v868
    %v912 = vadd.f32 %v245, %v888
    %v913 = vadd.f32 %v286, %v908
    %v914 = vxor.u32 %v910, 2147483648
    %v915 = vmul.f32 %v914, 1.442695
    %v916 = vpow.pop %v915
    %v917 = vadd.f32 %v916, 1.0
    %v918 = vrcp.pop %v917
    %v919 = vmul.f32 %v917, %v918
    %v920 = vsub.f32 1.0, %v919
    %v921 = vmul.f32 %v918, %v920
    %v922 = vadd.f32 %v918, %v921
    %vm923 = vweird.f32 %v917
    %vm924 = vweird.f32 %v918
    %vm925 = vmor %vm923, %vm924
    %v926 = vsel %vm925, %v918, %v922
    %v927 = vand.u32 2147483647, %v917
    %vm928 = vcmp.eq.f32.partialorder %v927, 8.507059e+37
    %v929 = vand.u32 %v917, 2147483648
    %v930 = vor.u32 1.1754944e-38, %v929
    %v931 = vsel %vm928, %v930, %v926
    %v932 = vmul.f32 1.0, %v931
    %v933 = vxor.u32 %v911, 2147483648
    %v934 = vmul.f32 %v933, 1.442695
    %v935 = vpow.pop %v934
    %v936 = vadd.f32 %v935, 1.0
    %v937 = vrcp.pop %v936
    %v938 = vmul.f32 %v936, %v937
    %v939 = vsub.f32 1.0, %v938
    %v940 = vmul.f32 %v937, %v939
    %v941 = vadd.f32 %v937, %v940
    %vm942 = vweird.f32 %v936
    %vm943 = vweird.f32 %v937
    %vm944 = vmor %vm942, %vm943
    %v945 = vsel %vm944, %v937, %v941
    %v946 = vand.u32 2147483647, %v936
    %vm947 = vcmp.eq.f32.partialorder %v946, 8.507059e+37
    %v948 = vand.u32 %v936, 2147483648
    %v949 = vor.u32 1.1754944e-38, %v948
    %v950 = vsel %vm947, %v949, %v945
    %v951 = vmul.f32 1.0, %v950
    %v952 = vtanh.pop %v912
    %v953 = vxor.u32 %v913, 2147483648
    %v954 = vmul.f32 %v953, 1.442695
    %v955 = vpow.pop %v954
    %v956 = vadd.f32 %v955, 1.0
    %v957 = vrcp.pop %v956
    %v958 = vmul.f32 %v956, %v957
    %v959 = vsub.f32 1.0, %v958
    %v960 = vmul.f32 %v957, %v959
    %v961 = vadd.f32 %v957, %v960
    %vm962 = vweird.f32 %v956
    %vm963 = vweird.f32 %v957
    %vm964 = vmor %vm962, %vm963
    %v965 = vsel %vm964, %v957, %v961
    %v966 = vand.u32 2147483647, %v956
    %vm967 = vcmp.eq.f32.partialorder %v966, 8.507059e+37
    %v968 = vand.u32 %v956, 2147483648
    %v969 = vor.u32 1.1754944e-38, %v968
    %v970 = vsel %vm967, %v969, %v965
    %v971 = vmul.f32 1.0, %v970
    %v972 = vmul.f32 %v951, %v829
    %v973 = vmul.f32 %v932, %v952
    %v974 = vadd.f32 %v972, %v973
    %v975 = vtanh.pop %v974
    %v976 = vmul.f32 %v971, %v975
    %vm977 = vcmp.gt.s32.totalorder %v364, 3
    %v978 = vsel %vm977, 1, 0
    %979 = vset.pattern.permute.xlu0 0
    %980 = vperm.xlu0 %979, %v978
    %v981 = vpop.permute.xlu0 %980
    %vm982 = vcmp.eq.s32.totalorder %v981, 1
    %v983 = vsel %vm982, %v976, %v828
    %v984 = vsel %vm982, %v974, %v829
    %985 = vmatpush.msra.mxu0 %v360
    %986 = vmatpush.msra.mxu0 %v356
    %987 = vmatpush.msra.mxu0 %v352
    %988 = vmatpush.msra.mxu0 %v348
    %989 = vmatpush.msra.mxu0 %v344
    %990 = vmatpush.msra.mxu0 %v340
    %991 = vmatpush.msra.mxu0 %v336
    %992 = vmatpush.msra.mxu0 %v332
    %993 = vmatpush.msra.mxu0 %v328
    %994 = vmatpush.msra.mxu0 %v324
    %995 = vmatpush.msra.mxu0 %v320
    %996 = vmatpush.msra.mxu0 %v316
    %997 = vmatpush.msra.mxu0 %v312
    %998 = vmatpush.msra.mxu0 %v308
    %999 = vmatpush.msra.mxu0 %v304
    %1000 = vmatpush.msra.mxu0 %v300
    %1001 = vmatmul.f32.gmra.mxu0 %v983
    %v1002 = vpop.f32.mrf.mxu0
    %v1003 = vadd.f32 0.0, %v1002
    %1004 = vdwg.mxu0
    %1005 = vmatpush.msra.mxu0 %v361
    %1006 = vmatpush.msra.mxu0 %v357
    %1007 = vmatpush.msra.mxu0 %v353
    %1008 = vmatpush.msra.mxu0 %v349
    %1009 = vmatpush.msra.mxu0 %v345
    %1010 = vmatpush.msra.mxu0 %v341
    %1011 = vmatpush.msra.mxu0 %v337
    %1012 = vmatpush.msra.mxu0 %v333
    %1013 = vmatpush.msra.mxu0 %v329
    %1014 = vmatpush.msra.mxu0 %v325
    %1015 = vmatpush.msra.mxu0 %v321
    %1016 = vmatpush.msra.mxu0 %v317
    %1017 = vmatpush.msra.mxu0 %v313
    %1018 = vmatpush.msra.mxu0 %v309
    %1019 = vmatpush.msra.mxu0 %v305
    %1020 = vmatpush.msra.mxu0 %v301
    %1021 = vmatmul.f32.gmra.mxu0 %v983
    %v1022 = vpop.f32.mrf.mxu0
    %v1023 = vadd.f32 0.0, %v1022
    %1024 = vdwg.mxu0
    %1025 = vmatpush.msra.mxu0 %v362
    %1026 = vmatpush.msra.mxu0 %v358
    %1027 = vmatpush.msra.mxu0 %v354
    %1028 = vmatpush.msra.mxu0 %v350
    %1029 = vmatpush.msra.mxu0 %v346
    %1030 = vmatpush.msra.mxu0 %v342
    %1031 = vmatpush.msra.mxu0 %v338
    %1032 = vmatpush.msra.mxu0 %v334
    %1033 = vmatpush.msra.mxu0 %v330
    %1034 = vmatpush.msra.mxu0 %v326
    %1035 = vmatpush.msra.mxu0 %v322
    %1036 = vmatpush.msra.mxu0 %v318
    %1037 = vmatpush.msra.mxu0 %v314
    %1038 = vmatpush.msra.mxu0 %v310
    %1039 = vmatpush.msra.mxu0 %v306
    %1040 = vmatpush.msra.mxu0 %v302
    %1041 = vmatmul.f32.gmra.mxu0 %v983
    %v1042 = vpop.f32.mrf.mxu0
    %v1043 = vadd.f32 0.0, %v1042
    %1044 = vdwg.mxu0
    %1045 = vmatpush.msra.mxu0 %v363
    %1046 = vmatpush.msra.mxu0 %v359
    %1047 = vmatpush.msra.mxu0 %v355
    %1048 = vmatpush.msra.mxu0 %v351
    %1049 = vmatpush.msra.mxu0 %v347
    %1050 = vmatpush.msra.mxu0 %v343
    %1051 = vmatpush.msra.mxu0 %v339
    %1052 = vmatpush.msra.mxu0 %v335
    %1053 = vmatpush.msra.mxu0 %v331
    %1054 = vmatpush.msra.mxu0 %v327
    %1055 = vmatpush.msra.mxu0 %v323
    %1056 = vmatpush.msra.mxu0 %v319
    %1057 = vmatpush.msra.mxu0 %v315
    %1058 = vmatpush.msra.mxu0 %v311
    %1059 = vmatpush.msra.mxu0 %v307
    %1060 = vmatpush.msra.mxu0 %v303
    %1061 = vmatmul.f32.gmra.mxu0 %v983
    %v1062 = vpop.f32.mrf.mxu0
    %v1063 = vadd.f32 0.0, %v1062
    %1064 = vdwg.mxu0
    %v1065 = vadd.f32 %v166, %v1003
    %v1066 = vadd.f32 %v207, %v1023
    %v1067 = vadd.f32 %v248, %v1043
    %v1068 = vadd.f32 %v289, %v1063
    %v1069 = vxor.u32 %v1065, 2147483648
    %v1070 = vmul.f32 %v1069, 1.442695
    %v1071 = vpow.pop %v1070
    %v1072 = vadd.f32 %v1071, 1.0
    %v1073 = vrcp.pop %v1072
    %v1074 = vmul.f32 %v1072, %v1073
    %v1075 = vsub.f32 1.0, %v1074
    %v1076 = vmul.f32 %v1073, %v1075
    %v1077 = vadd.f32 %v1073, %v1076
    %vm1078 = vweird.f32 %v1072
    %vm1079 = vweird.f32 %v1073
    %vm1080 = vmor %vm1078, %vm1079
    %v1081 = vsel %vm1080, %v1073, %v1077
    %v1082 = vand.u32 2147483647, %v1072
    %vm1083 = vcmp.eq.f32.partialorder %v1082, 8.507059e+37
    %v1084 = vand.u32 %v1072, 2147483648
    %v1085 = vor.u32 1.1754944e-38, %v1084
    %v1086 = vsel %vm1083, %v1085, %v1081
    %v1087 = vmul.f32 1.0, %v1086
    %v1088 = vxor.u32 %v1066, 2147483648
    %v1089 = vmul.f32 %v1088, 1.442695
    %v1090 = vpow.pop %v1089
    %v1091 = vadd.f32 %v1090, 1.0
    %v1092 = vrcp.pop %v1091
    %v1093 = vmul.f32 %v1091, %v1092
    %v1094 = vsub.f32 1.0, %v1093
    %v1095 = vmul.f32 %v1092, %v1094
    %v1096 = vadd.f32 %v1092, %v1095
    %vm1097 = vweird.f32 %v1091
    %vm1098 = vweird.f32 %v1092
    %vm1099 = vmor %vm1097, %vm1098
    %v1100 = vsel %vm1099, %v1092, %v1096
    %v1101 = vand.u32 2147483647, %v1091
    %vm1102 = vcmp.eq.f32.partialorder %v1101, 8.507059e+37
    %v1103 = vand.u32 %v1091, 2147483648
    %v1104 = vor.u32 1.1754944e-38, %v1103
    %v1105 = vsel %vm1102, %v1104, %v1100
    %v1106 = vmul.f32 1.0, %v1105
    %v1107 = vtanh.pop %v1067
    %v1108 = vxor.u32 %v1068, 2147483648
    %v1109 = vmul.f32 %v1108, 1.442695
    %v1110 = vpow.pop %v1109
    %v1111 = vadd.f32 %v1110, 1.0
    %v1112 = vrcp.pop %v1111
    %v1113 = vmul.f32 %v1111, %v1112
    %v1114 = vsub.f32 1.0, %v1113
    %v1115 = vmul.f32 %v1112, %v1114
    %v1116 = vadd.f32 %v1112, %v1115
    %vm1117 = vweird.f32 %v1111
    %vm1118 = vweird.f32 %v1112
    %vm1119 = vmor %vm1117, %vm1118
    %v1120 = vsel %vm1119, %v1112, %v1116
    %v1121 = vand.u32 2147483647, %v1111
    %vm1122 = vcmp.eq.f32.partialorder %v1121, 8.507059e+37
    %v1123 = vand.u32 %v1111, 2147483648
    %v1124 = vor.u32 1.1754944e-38, %v1123
    %v1125 = vsel %vm1122, %v1124, %v1120
    %v1126 = vmul.f32 1.0, %v1125
    %v1127 = vmul.f32 %v1106, %v984
    %v1128 = vmul.f32 %v1087, %v1107
    %v1129 = vadd.f32 %v1127, %v1128
    %v1130 = vtanh.pop %v1129
    %v1131 = vmul.f32 %v1126, %v1130
    %vm1132 = vcmp.gt.s32.totalorder %v364, 4
    %v1133 = vsel %vm1132, 1, 0
    %1134 = vset.pattern.permute.xlu0 0
    %1135 = vperm.xlu0 %1134, %v1133
    %v1136 = vpop.permute.xlu0 %1135
    %vm1137 = vcmp.eq.s32.totalorder %v1136, 1
    %v1138 = vsel %vm1137, %v1131, %v983
    %v1139 = vsel %vm1137, %v1129, %v984
    %1140 = vmatpush.msra.mxu0 %v360
    %1141 = vmatpush.msra.mxu0 %v356
    %1142 = vmatpush.msra.mxu0 %v352
    %1143 = vmatpush.msra.mxu0 %v348
    %1144 = vmatpush.msra.mxu0 %v344
    %1145 = vmatpush.msra.mxu0 %v340
    %1146 = vmatpush.msra.mxu0 %v336
    %1147 = vmatpush.msra.mxu0 %v332
    %1148 = vmatpush.msra.mxu0 %v328
    %1149 = vmatpush.msra.mxu0 %v324
    %1150 = vmatpush.msra.mxu0 %v320
    %1151 = vmatpush.msra.mxu0 %v316
    %1152 = vmatpush.msra.mxu0 %v312
    %1153 = vmatpush.msra.mxu0 %v308
    %1154 = vmatpush.msra.mxu0 %v304
    %1155 = vmatpush.msra.mxu0 %v300
    %1156 = vmatmul.f32.gmra.mxu0 %v1138
    %v1157 = vpop.f32.mrf.mxu0
    %v1158 = vadd.f32 0.0, %v1157
    %1159 = vdwg.mxu0
    %1160 = vmatpush.msra.mxu0 %v361
    %1161 = vmatpush.msra.mxu0 %v357
    %1162 = vmatpush.msra.mxu0 %v353
    %1163 = vmatpush.msra.mxu0 %v349
    %1164 = vmatpush.msra.mxu0 %v345
    %1165 = vmatpush.msra.mxu0 %v341
    %1166 = vmatpush.msra.mxu0 %v337
    %1167 = vmatpush.msra.mxu0 %v333
    %1168 = vmatpush.msra.mxu0 %v329
    %1169 = vmatpush.msra.mxu0 %v325
    %1170 = vmatpush.msra.mxu0 %v321
    %1171 = vmatpush.msra.mxu0 %v317
    %1172 = vmatpush.msra.mxu0 %v313
    %1173 = vmatpush.msra.mxu0 %v309
    %1174 = vmatpush.msra.mxu0 %v305
    %1175 = vmatpush.msra.mxu0 %v301
    %1176 = vmatmul.f32.gmra.mxu0 %v1138
    %v1177 = vpop.f32.mrf.mxu0
    %v1178 = vadd.f32 0.0, %v1177
    %1179 = vdwg.mxu0
    %1180 = vmatpush.msra.mxu0 %v362
    %1181 = vmatpush.msra.mxu0 %v358
    %1182 = vmatpush.msra.mxu0 %v354
    %1183 = vmatpush.msra.mxu0 %v350
    %1184 = vmatpush.msra.mxu0 %v346
    %1185 = vmatpush.msra.mxu0 %v342
    %1186 = vmatpush.msra.mxu0 %v338
    %1187 = vmatpush.msra.mxu0 %v334
    %1188 = vmatpush.msra.mxu0 %v330
    %1189 = vmatpush.msra.mxu0 %v326
    %1190 = vmatpush.msra.mxu0 %v322
    %1191 = vmatpush.msra.mxu0 %v318
    %1192 = vmatpush.msra.mxu0 %v314
    %1193 = vmatpush.msra.mxu0 %v310
    %1194 = vmatpush.msra.mxu0 %v306
    %1195 = vmatpush.msra.mxu0 %v302
    %1196 = vmatmul.f32.gmra.mxu0 %v1138
    %v1197 = vpop.f32.mrf.mxu0
    %v1198 = vadd.f32 0.0, %v1197
    %1199 = vdwg.mxu0
    %1200 = vmatpush.msra.mxu0 %v363
    %1201 = vmatpush.msra.mxu0 %v359
    %1202 = vmatpush.msra.mxu0 %v355
    %1203 = vmatpush.msra.mxu0 %v351
    %1204 = vmatpush.msra.mxu0 %v347
    %1205 = vmatpush.msra.mxu0 %v343
    %1206 = vmatpush.msra.mxu0 %v339
    %1207 = vmatpush.msra.mxu0 %v335
    %1208 = vmatpush.msra.mxu0 %v331
    %1209 = vmatpush.msra.mxu0 %v327
    %1210 = vmatpush.msra.mxu0 %v323
    %1211 = vmatpush.msra.mxu0 %v319
    %1212 = vmatpush.msra.mxu0 %v315
    %1213 = vmatpush.msra.mxu0 %v311
    %1214 = vmatpush.msra.mxu0 %v307
    %1215 = vmatpush.msra.mxu0 %v303
    %1216 = vmatmul.f32.gmra.mxu0 %v1138
    %v1217 = vpop.f32.mrf.mxu0
    %v1218 = vadd.f32 0.0, %v1217
    %1219 = vdwg.mxu0
    %v1220 = vadd.f32 %v169, %v1158
    %v1221 = vadd.f32 %v210, %v1178
    %v1222 = vadd.f32 %v251, %v1198
    %v1223 = vadd.f32 %v292, %v1218
    %v1224 = vxor.u32 %v1220, 2147483648
    %v1225 = vmul.f32 %v1224, 1.442695
    %v1226 = vpow.pop %v1225
    %v1227 = vadd.f32 %v1226, 1.0
    %v1228 = vrcp.pop %v1227
    %v1229 = vmul.f32 %v1227, %v1228
    %v1230 = vsub.f32 1.0, %v1229
    %v1231 = vmul.f32 %v1228, %v1230
    %v1232 = vadd.f32 %v1228, %v1231
    %vm1233 = vweird.f32 %v1227
    %vm1234 = vweird.f32 %v1228
    %vm1235 = vmor %vm1233, %vm1234
    %v1236 = vsel %vm1235, %v1228, %v1232
    %v1237 = vand.u32 2147483647, %v1227
    %vm1238 = vcmp.eq.f32.partialorder %v1237, 8.507059e+37
    %v1239 = vand.u32 %v1227, 2147483648
    %v1240 = vor.u32 1.1754944e-38, %v1239
    %v1241 = vsel %vm1238, %v1240, %v1236
    %v1242 = vmul.f32 1.0, %v1241
    %v1243 = vxor.u32 %v1221, 2147483648
    %v1244 = vmul.f32 %v1243, 1.442695
    %v1245 = vpow.pop %v1244
    %v1246 = vadd.f32 %v1245, 1.0
    %v1247 = vrcp.pop %v1246
    %v1248 = vmul.f32 %v1246, %v1247
    %v1249 = vsub.f32 1.0, %v1248
    %v1250 = vmul.f32 %v1247, %v1249
    %v1251 = vadd.f32 %v1247, %v1250
    %vm1252 = vweird.f32 %v1246
    %vm1253 = vweird.f32 %v1247
    %vm1254 = vmor %vm1252, %vm1253
    %v1255 = vsel %vm1254, %v1247, %v1251
    %v1256 = vand.u32 2147483647, %v1246
    %vm1257 = vcmp.eq.f32.partialorder %v1256, 8.507059e+37
    %v1258 = vand.u32 %v1246, 2147483648
    %v1259 = vor.u32 1.1754944e-38, %v1258
    %v1260 = vsel %vm1257, %v1259, %v1255
    %v1261 = vmul.f32 1.0, %v1260
    %v1262 = vtanh.pop %v1222
    %v1263 = vxor.u32 %v1223, 2147483648
    %v1264 = vmul.f32 %v1263, 1.442695
    %v1265 = vpow.pop %v1264
    %v1266 = vadd.f32 %v1265, 1.0
    %v1267 = vrcp.pop %v1266
    %v1268 = vmul.f32 %v1266, %v1267
    %v1269 = vsub.f32 1.0, %v1268
    %v1270 = vmul.f32 %v1267, %v1269
    %v1271 = vadd.f32 %v1267, %v1270
    %vm1272 = vweird.f32 %v1266
    %vm1273 = vweird.f32 %v1267
    %vm1274 = vmor %vm1272, %vm1273
    %v1275 = vsel %vm1274, %v1267, %v1271
    %v1276 = vand.u32 2147483647, %v1266
    %vm1277 = vcmp.eq.f32.partialorder %v1276, 8.507059e+37
    %v1278 = vand.u32 %v1266, 2147483648
    %v1279 = vor.u32 1.1754944e-38, %v1278
    %v1280 = vsel %vm1277, %v1279, %v1275
    %v1281 = vmul.f32 1.0, %v1280
    %v1282 = vmul.f32 %v1261, %v1139
    %v1283 = vmul.f32 %v1242, %v1262
    %v1284 = vadd.f32 %v1282, %v1283
    %v1285 = vtanh.pop %v1284
    %v1286 = vmul.f32 %v1281, %v1285
    %vm1287 = vcmp.gt.s32.totalorder %v364, 5
    %v1288 = vsel %vm1287, 1, 0
    %1289 = vset.pattern.permute.xlu0 0
    %1290 = vperm.xlu0 %1289, %v1288
    %v1291 = vpop.permute.xlu0 %1290
    %vm1292 = vcmp.eq.s32.totalorder %v1291, 1
    %v1293 = vsel %vm1292, %v1286, %v1138
    %v1294 = vsel %vm1292, %v1284, %v1139
    %1295 = vmatpush.msra.mxu0 %v360
    %1296 = vmatpush.msra.mxu0 %v356
    %1297 = vmatpush.msra.mxu0 %v352
    %1298 = vmatpush.msra.mxu0 %v348
    %1299 = vmatpush.msra.mxu0 %v344
    %1300 = vmatpush.msra.mxu0 %v340
    %1301 = vmatpush.msra.mxu0 %v336
    %1302 = vmatpush.msra.mxu0 %v332
    %1303 = vmatpush.msra.mxu0 %v328
    %1304 = vmatpush.msra.mxu0 %v324
    %1305 = vmatpush.msra.mxu0 %v320
    %1306 = vmatpush.msra.mxu0 %v316
    %1307 = vmatpush.msra.mxu0 %v312
    %1308 = vmatpush.msra.mxu0 %v308
    %1309 = vmatpush.msra.mxu0 %v304
    %1310 = vmatpush.msra.mxu0 %v300
    %1311 = vmatmul.f32.gmra.mxu0 %v1293
    %v1312 = vpop.f32.mrf.mxu0
    %v1313 = vadd.f32 0.0, %v1312
    %1314 = vdwg.mxu0
    %1315 = vmatpush.msra.mxu0 %v361
    %1316 = vmatpush.msra.mxu0 %v357
    %1317 = vmatpush.msra.mxu0 %v353
    %1318 = vmatpush.msra.mxu0 %v349
    %1319 = vmatpush.msra.mxu0 %v345
    %1320 = vmatpush.msra.mxu0 %v341
    %1321 = vmatpush.msra.mxu0 %v337
    %1322 = vmatpush.msra.mxu0 %v333
    %1323 = vmatpush.msra.mxu0 %v329
    %1324 = vmatpush.msra.mxu0 %v325
    %1325 = vmatpush.msra.mxu0 %v321
    %1326 = vmatpush.msra.mxu0 %v317
    %1327 = vmatpush.msra.mxu0 %v313
    %1328 = vmatpush.msra.mxu0 %v309
    %1329 = vmatpush.msra.mxu0 %v305
    %1330 = vmatpush.msra.mxu0 %v301
    %1331 = vmatmul.f32.gmra.mxu0 %v1293
    %v1332 = vpop.f32.mrf.mxu0
    %v1333 = vadd.f32 0.0, %v1332
    %1334 = vdwg.mxu0
    %1335 = vmatpush.msra.mxu0 %v362
    %1336 = vmatpush.msra.mxu0 %v358
    %1337 = vmatpush.msra.mxu0 %v354
    %1338 = vmatpush.msra.mxu0 %v350
    %1339 = vmatpush.msra.mxu0 %v346
    %1340 = vmatpush.msra.mxu0 %v342
    %1341 = vmatpush.msra.mxu0 %v338
    %1342 = vmatpush.msra.mxu0 %v334
    %1343 = vmatpush.msra.mxu0 %v330
    %1344 = vmatpush.msra.mxu0 %v326
    %1345 = vmatpush.msra.mxu0 %v322
    %1346 = vmatpush.msra.mxu0 %v318
    %1347 = vmatpush.msra.mxu0 %v314
    %1348 = vmatpush.msra.mxu0 %v310
    %1349 = vmatpush.msra.mxu0 %v306
    %1350 = vmatpush.msra.mxu0 %v302
    %1351 = vmatmul.f32.gmra.mxu0 %v1293
    %v1352 = vpop.f32.mrf.mxu0
    %v1353 = vadd.f32 0.0, %v1352
    %1354 = vdwg.mxu0
    %1355 = vmatpush.msra.mxu0 %v363
    %1356 = vmatpush.msra.mxu0 %v359
    %1357 = vmatpush.msra.mxu0 %v355
    %1358 = vmatpush.msra.mxu0 %v351
    %1359 = vmatpush.msra.mxu0 %v347
    %1360 = vmatpush.msra.mxu0 %v343
    %1361 = vmatpush.msra.mxu0 %v339
    %1362 = vmatpush.msra.mxu0 %v335
    %1363 = vmatpush.msra.mxu0 %v331
    %1364 = vmatpush.msra.mxu0 %v327
    %1365 = vmatpush.msra.mxu0 %v323
    %1366 = vmatpush.msra.mxu0 %v319
    %1367 = vmatpush.msra.mxu0 %v315
    %1368 = vmatpush.msra.mxu0 %v311
    %1369 = vmatpush.msra.mxu0 %v307
    %1370 = vmatpush.msra.mxu0 %v303
    %1371 = vmatmul.f32.gmra.mxu0 %v1293
    %v1372 = vpop.f32.mrf.mxu0
    %v1373 = vadd.f32 0.0, %v1372
    %1374 = vdwg.mxu0
    %v1375 = vadd.f32 %v172, %v1313
    %v1376 = vadd.f32 %v213, %v1333
    %v1377 = vadd.f32 %v254, %v1353
    %v1378 = vadd.f32 %v295, %v1373
    %v1379 = vxor.u32 %v1375, 2147483648
    %v1380 = vmul.f32 %v1379, 1.442695
    %v1381 = vpow.pop %v1380
    %v1382 = vadd.f32 %v1381, 1.0
    %v1383 = vrcp.pop %v1382
    %v1384 = vmul.f32 %v1382, %v1383
    %v1385 = vsub.f32 1.0, %v1384
    %v1386 = vmul.f32 %v1383, %v1385
    %v1387 = vadd.f32 %v1383, %v1386
    %vm1388 = vweird.f32 %v1382
    %vm1389 = vweird.f32 %v1383
    %vm1390 = vmor %vm1388, %vm1389
    %v1391 = vsel %vm1390, %v1383, %v1387
    %v1392 = vand.u32 2147483647, %v1382
    %vm1393 = vcmp.eq.f32.partialorder %v1392, 8.507059e+37
    %v1394 = vand.u32 %v1382, 2147483648
    %v1395 = vor.u32 1.1754944e-38, %v1394
    %v1396 = vsel %vm1393, %v1395, %v1391
    %v1397 = vmul.f32 1.0, %v1396
    %v1398 = vxor.u32 %v1376, 2147483648
    %v1399 = vmul.f32 %v1398, 1.442695
    %v1400 = vpow.pop %v1399
    %v1401 = vadd.f32 %v1400, 1.0
    %v1402 = vrcp.pop %v1401
    %v1403 = vmul.f32 %v1401, %v1402
    %v1404 = vsub.f32 1.0, %v1403
    %v1405 = vmul.f32 %v1402, %v1404
    %v1406 = vadd.f32 %v1402, %v1405
    %vm1407 = vweird.f32 %v1401
    %vm1408 = vweird.f32 %v1402
    %vm1409 = vmor %vm1407, %vm1408
    %v1410 = vsel %vm1409, %v1402, %v1406
    %v1411 = vand.u32 2147483647, %v1401
    %vm1412 = vcmp.eq.f32.partialorder %v1411, 8.507059e+37
    %v1413 = vand.u32 %v1401, 2147483648
    %v1414 = vor.u32 1.1754944e-38, %v1413
    %v1415 = vsel %vm1412, %v1414, %v1410
    %v1416 = vmul.f32 1.0, %v1415
    %v1417 = vtanh.pop %v1377
    %v1418 = vxor.u32 %v1378, 2147483648
    %v1419 = vmul.f32 %v1418, 1.442695
    %v1420 = vpow.pop %v1419
    %v1421 = vadd.f32 %v1420, 1.0
    %v1422 = vrcp.pop %v1421
    %v1423 = vmul.f32 %v1421, %v1422
    %v1424 = vsub.f32 1.0, %v1423
    %v1425 = vmul.f32 %v1422, %v1424
    %v1426 = vadd.f32 %v1422, %v1425
    %vm1427 = vweird.f32 %v1421
    %vm1428 = vweird.f32 %v1422
    %vm1429 = vmor %vm1427, %vm1428
    %v1430 = vsel %vm1429, %v1422, %v1426
    %v1431 = vand.u32 2147483647, %v1421
    %vm1432 = vcmp.eq.f32.partialorder %v1431, 8.507059e+37
    %v1433 = vand.u32 %v1421, 2147483648
    %v1434 = vor.u32 1.1754944e-38, %v1433
    %v1435 = vsel %vm1432, %v1434, %v1430
    %v1436 = vmul.f32 1.0, %v1435
    %v1437 = vmul.f32 %v1416, %v1294
    %v1438 = vmul.f32 %v1397, %v1417
    %v1439 = vadd.f32 %v1437, %v1438
    %v1440 = vtanh.pop %v1439
    %v1441 = vmul.f32 %v1436, %v1440
    %vm1442 = vcmp.gt.s32.totalorder %v364, 6
    %v1443 = vsel %vm1442, 1, 0
    %1444 = vset.pattern.permute.xlu0 0
    %1445 = vperm.xlu0 %1444, %v1443
    %v1446 = vpop.permute.xlu0 %1445
    %vm1447 = vcmp.eq.s32.totalorder %v1446, 1
    %v1448 = vsel %vm1447, %v1441, %v1293
    %v1449 = vsel %vm1447, %v1439, %v1294
    %1450 = vmatpush.msra.mxu0 %v360
    %1451 = vmatpush.msra.mxu0 %v356
    %1452 = vmatpush.msra.mxu0 %v352
    %1453 = vmatpush.msra.mxu0 %v348
    %1454 = vmatpush.msra.mxu0 %v344
    %1455 = vmatpush.msra.mxu0 %v340
    %1456 = vmatpush.msra.mxu0 %v336
    %1457 = vmatpush.msra.mxu0 %v332
    %1458 = vmatpush.msra.mxu0 %v328
    %1459 = vmatpush.msra.mxu0 %v324
    %1460 = vmatpush.msra.mxu0 %v320
    %1461 = vmatpush.msra.mxu0 %v316
    %1462 = vmatpush.msra.mxu0 %v312
    %1463 = vmatpush.msra.mxu0 %v308
    %1464 = vmatpush.msra.mxu0 %v304
    %1465 = vmatpush.msra.mxu0 %v300
    %1466 = vmatmul.f32.gmra.mxu0 %v1448
    %v1467 = vpop.f32.mrf.mxu0
    %v1468 = vadd.f32 0.0, %v1467
    %1469 = vdwg.mxu0
    %1470 = vmatpush.msra.mxu0 %v361
    %1471 = vmatpush.msra.mxu0 %v357
    %1472 = vmatpush.msra.mxu0 %v353
    %1473 = vmatpush.msra.mxu0 %v349
    %1474 = vmatpush.msra.mxu0 %v345
    %1475 = vmatpush.msra.mxu0 %v341
    %1476 = vmatpush.msra.mxu0 %v337
    %1477 = vmatpush.msra.mxu0 %v333
    %1478 = vmatpush.msra.mxu0 %v329
    %1479 = vmatpush.msra.mxu0 %v325
    %1480 = vmatpush.msra.mxu0 %v321
    %1481 = vmatpush.msra.mxu0 %v317
    %1482 = vmatpush.msra.mxu0 %v313
    %1483 = vmatpush.msra.mxu0 %v309
    %1484 = vmatpush.msra.mxu0 %v305
    %1485 = vmatpush.msra.mxu0 %v301
    %1486 = vmatmul.f32.gmra.mxu0 %v1448
    %v1487 = vpop.f32.mrf.mxu0
    %v1488 = vadd.f32 0.0, %v1487
    %1489 = vdwg.mxu0
    %1490 = vmatpush.msra.mxu0 %v362
    %1491 = vmatpush.msra.mxu0 %v358
    %1492 = vmatpush.msra.mxu0 %v354
    %1493 = vmatpush.msra.mxu0 %v350
    %1494 = vmatpush.msra.mxu0 %v346
    %1495 = vmatpush.msra.mxu0 %v342
    %1496 = vmatpush.msra.mxu0 %v338
    %1497 = vmatpush.msra.mxu0 %v334
    %1498 = vmatpush.msra.mxu0 %v330
    %1499 = vmatpush.msra.mxu0 %v326
    %1500 = vmatpush.msra.mxu0 %v322
    %1501 = vmatpush.msra.mxu0 %v318
    %1502 = vmatpush.msra.mxu0 %v314
    %1503 = vmatpush.msra.mxu0 %v310
    %1504 = vmatpush.msra.mxu0 %v306
    %1505 = vmatpush.msra.mxu0 %v302
    %1506 = vmatmul.f32.gmra.mxu0 %v1448
    %v1507 = vpop.f32.mrf.mxu0
    %v1508 = vadd.f32 0.0, %v1507
    %1509 = vdwg.mxu0
    %1510 = vmatpush.msra.mxu0 %v363
    %1511 = vmatpush.msra.mxu0 %v359
    %1512 = vmatpush.msra.mxu0 %v355
    %1513 = vmatpush.msra.mxu0 %v351
    %1514 = vmatpush.msra.mxu0 %v347
    %1515 = vmatpush.msra.mxu0 %v343
    %1516 = vmatpush.msra.mxu0 %v339
    %1517 = vmatpush.msra.mxu0 %v335
    %1518 = vmatpush.msra.mxu0 %v331
    %1519 = vmatpush.msra.mxu0 %v327
    %1520 = vmatpush.msra.mxu0 %v323
    %1521 = vmatpush.msra.mxu0 %v319
    %1522 = vmatpush.msra.mxu0 %v315
    %1523 = vmatpush.msra.mxu0 %v311
    %1524 = vmatpush.msra.mxu0 %v307
    %1525 = vmatpush.msra.mxu0 %v303
    %1526 = vmatmul.f32.gmra.mxu0 %v1448
    %v1527 = vpop.f32.mrf.mxu0
    %v1528 = vadd.f32 0.0, %v1527
    %1529 = vdwg.mxu0
    %v1530 = vadd.f32 %v175, %v1468
    %v1531 = vadd.f32 %v216, %v1488
    %v1532 = vadd.f32 %v257, %v1508
    %v1533 = vadd.f32 %v298, %v1528
    %v1534 = vxor.u32 %v1530, 2147483648
    %v1535 = vmul.f32 %v1534, 1.442695
    %v1536 = vpow.pop %v1535
    %v1537 = vadd.f32 %v1536, 1.0
    %v1538 = vrcp.pop %v1537
    %v1539 = vmul.f32 %v1537, %v1538
    %v1540 = vsub.f32 1.0, %v1539
    %v1541 = vmul.f32 %v1538, %v1540
    %v1542 = vadd.f32 %v1538, %v1541
    %vm1543 = vweird.f32 %v1537
    %vm1544 = vweird.f32 %v1538
    %vm1545 = vmor %vm1543, %vm1544
    %v1546 = vsel %vm1545, %v1538, %v1542
    %v1547 = vand.u32 2147483647, %v1537
    %vm1548 = vcmp.eq.f32.partialorder %v1547, 8.507059e+37
    %v1549 = vand.u32 %v1537, 2147483648
    %v1550 = vor.u32 1.1754944e-38, %v1549
    %v1551 = vsel %vm1548, %v1550, %v1546
    %v1552 = vmul.f32 1.0, %v1551
    %v1553 = vxor.u32 %v1531, 2147483648
    %v1554 = vmul.f32 %v1553, 1.442695
    %v1555 = vpow.pop %v1554
    %v1556 = vadd.f32 %v1555, 1.0
    %v1557 = vrcp.pop %v1556
    %v1558 = vmul.f32 %v1556, %v1557
    %v1559 = vsub.f32 1.0, %v1558
    %v1560 = vmul.f32 %v1557, %v1559
    %v1561 = vadd.f32 %v1557, %v1560
    %vm1562 = vweird.f32 %v1556
    %vm1563 = vweird.f32 %v1557
    %vm1564 = vmor %vm1562, %vm1563
    %v1565 = vsel %vm1564, %v1557, %v1561
    %v1566 = vand.u32 2147483647, %v1556
    %vm1567 = vcmp.eq.f32.partialorder %v1566, 8.507059e+37
    %v1568 = vand.u32 %v1556, 2147483648
    %v1569 = vor.u32 1.1754944e-38, %v1568
    %v1570 = vsel %vm1567, %v1569, %v1565
    %v1571 = vmul.f32 1.0, %v1570
    %v1572 = vtanh.pop %v1532
    %v1573 = vxor.u32 %v1533, 2147483648
    %v1574 = vmul.f32 %v1573, 1.442695
    %v1575 = vpow.pop %v1574
    %v1576 = vadd.f32 %v1575, 1.0
    %v1577 = vrcp.pop %v1576
    %v1578 = vmul.f32 %v1576, %v1577
    %v1579 = vsub.f32 1.0, %v1578
    %v1580 = vmul.f32 %v1577, %v1579
    %v1581 = vadd.f32 %v1577, %v1580
    %vm1582 = vweird.f32 %v1576
    %vm1583 = vweird.f32 %v1577
    %vm1584 = vmor %vm1582, %vm1583
    %v1585 = vsel %vm1584, %v1577, %v1581
    %v1586 = vand.u32 2147483647, %v1576
    %vm1587 = vcmp.eq.f32.partialorder %v1586, 8.507059e+37
    %v1588 = vand.u32 %v1576, 2147483648
    %v1589 = vor.u32 1.1754944e-38, %v1588
    %v1590 = vsel %vm1587, %v1589, %v1585
    %v1591 = vmul.f32 1.0, %v1590
    %v1592 = vmul.f32 %v1571, %v1449
    %v1593 = vmul.f32 %v1552, %v1572
    %v1594 = vadd.f32 %v1592, %v1593
    %v1595 = vtanh.pop %v1594
    %v1596 = vmul.f32 %v1591, %v1595
    %vm1597 = vcmp.gt.s32.totalorder %v364, 7
    %v1598 = vsel %vm1597, 1, 0
    %1599 = vset.pattern.permute.xlu0 0
    %1600 = vperm.xlu0 %1599, %v1598
    %v1601 = vpop.permute.xlu0 %1600
    %vm1602 = vcmp.eq.s32.totalorder %v1601, 1
    %v1603 = vsel %vm1602, %v1596, %v1448
    %v1604 = vld [vmem:[%s5] sm:$0x1]
    %v1606 = vperm.slane %v1604, 0
    %v1608 = vmul.f32 %v1603, %v1606
    %1609 = vadd.xlane.f32.xlu0 %v1608
    %v1610 = vpop.xlane.xlu0 %1609
    %v1611 = vld [vmem:[#allocation2] sm:$0x1]
    %v1613 = vperm.slane %v1611, 0
    %v1615 = vadd.f32 %v1610, %v1613
    %v1616 = vxor.u32 %v1615, 2147483648
    %v1617 = vmul.f32 %v1616, 1.442695
    %v1618 = vpow.pop %v1617
    %v1619 = vadd.f32 %v1618, 1.0
    %v1620 = vrcp.pop %v1619
    %v1621 = vmul.f32 %v1619, %v1620
    %v1622 = vsub.f32 1.0, %v1621
    %v1623 = vmul.f32 %v1620, %v1622
    %v1624 = vadd.f32 %v1620, %v1623
    %vm1625 = vweird.f32 %v1619
    %vm1626 = vweird.f32 %v1620
    %vm1627 = vmor %vm1625, %vm1626
    %v1628 = vsel %vm1627, %v1620, %v1624
    %v1629 = vand.u32 2147483647, %v1619
    %vm1630 = vcmp.eq.f32.partialorder %v1629, 8.507059e+37
    %v1631 = vand.u32 %v1619, 2147483648
    %v1632 = vor.u32 1.1754944e-38, %v1631
    %v1633 = vsel %vm1630, %v1632, %v1628
    %v1634 = vmul.f32 1.0, %v1633
    %vm1635 = vcmask 7168
    %1636 = vst.msk [vmem:[%s7] sm:$0xff] %vm1635, %v1634
    // Predicated region
    $region38: #{tpu_custom_call.1} parent=1 // pred_check
      _
    $region39: #{tpu_custom_call.1} parent=1 // pred_check_branch
      %1638 = sbr.rel (0) target = $region41
    $region40: #{tpu_custom_call.1} parent=1 // pred_region
      _
    $region41: #{tpu_custom_call.1} parent=1 // pred_fallthru
      _
    // Predicated region
    $region42: #{tpu_custom_call.1} parent=1 // pred_check
      _
    $region43: #{tpu_custom_call.1} parent=1 // pred_check_branch
      %1640 = sbr.rel (0) target = $region45
    $region44: #{tpu_custom_call.1} parent=1 // pred_region
      _
    $region45: #{tpu_custom_call.1} parent=1 // pred_fallthru
      _
    %1641 = vsyncpa [#allocation4], 1
    %1642 = vsyncpa [#allocation6], 1

</llo_original>
